<compile_context>
chip_gen: v7x
topology: tpu7x:2x2x1
jax: 0.10.0
libtpu: 0.0.40
codegen_flags: <defaults>
</compile_context>

<pallas_src>
import jax
import jax.numpy as jnp
from jax.experimental import pallas as pl
from jax.experimental.pallas import tpu as pltpu


def _edge_mlp_kernel(src_ref, dsto_ref, a_ref, b1_ref, w2_ref, b2_ref,
                     w3_ref, b3_ref, o_ref):
    """One tile of edges, transposed (features x edges) layout.

    src_ref  : (1, TE) int32        src node index per edge
    dsto_ref : (1, TE) int32        dst node index per edge, pre-offset by +N
    a_ref    : (hidden, 2N) bf16    [W1a^T @ nf^T | W1b^T @ nf^T]
    b1_ref   : (hidden, 1) f32
    w2_ref   : (half, hidden) bf16  W2^T
    b2_ref   : (half, 1) f32
    w3_ref   : (half, 1) f32        W3 as a column (VPU path)
    b3_ref   : (1, 1) f32
    o_ref    : (1, TE) f32          per-edge probability (lane-dense)
    """
    n2 = a_ref.shape[1]                                  # 2 * num_nodes

    src = src_ref[...]                                   # (1, TE) int32
    dsto = dsto_ref[...]                                 # (1, TE), in [N, 2N)

    # Stacked one-hot gather matrix: row r lights up for edges whose src == r
    # (r < N) or whose dst == r - N (r >= N).  The two compares are disjoint,
    # so OR-ing them gives the exact concatenated one-hot.  (2N, 1) iota only;
    # the lane broadcast happens inside the compare.
    rows = jax.lax.broadcasted_iota(jnp.int32, (n2, 1), 0)            # (2N, 1)
    oh = jnp.logical_or(rows == src, rows == dsto).astype(jnp.bfloat16)  # (2N, TE)

    # Gather + concat + Linear1 as a single MXU matmul (K = 2N).
    h1 = jnp.dot(a_ref[...], oh,
                 preferred_element_type=jnp.float32) + b1_ref[...]    # (hidden, TE)
    h1 = jnp.maximum(h1, 0.0).astype(jnp.bfloat16)

    # Layer 2: Linear + ReLU (f32 accumulation, f32 epilogue).
    h2 = jnp.dot(w2_ref[...], h1,
                 preferred_element_type=jnp.float32) + b2_ref[...]    # (half, TE)
    h2 = jnp.maximum(h2, 0.0)

    # Layer 3: output width 1 -> VPU multiply + sublane reduce (skip MXU).
    h3 = jnp.sum(h2 * w3_ref[...], axis=0, keepdims=True) + b3_ref[...]  # (1, TE)

    o_ref[...] = jax.nn.sigmoid(h3).astype(o_ref.dtype)


def _vmem_limit_bytes():
    """Generation-aware scoped-VMEM limit with a conservative fallback."""
    try:
        cap = int(pltpu.get_tpu_info().vmem_capacity_bytes)
    except Exception:
        return 32 * 1024 * 1024
    # Leave headroom for Mosaic-internal scratch; clamp to a sane range
    # (~48 MiB usable on v7x, up to ~100 MiB on v5e/v6e).
    return int(min(max(cap - 16 * 1024 * 1024, 32 * 1024 * 1024),
                   100 * 1024 * 1024))


def edge_predictor_pallas(node_features, edge_index, params, *, tile_edges=2048):
    """Pallas implementation of EdgePredictor.forward.

    node_features : [N, node_dim] float32
    edge_index    : [2, E] int32
    returns       : [E, 1] float32
    """
    w1, b1, w2, b2, w3, b3 = params
    n_nodes, node_dim = node_features.shape
    hidden = w1.shape[1]
    half = w2.shape[1]
    E = edge_index.shape[1]

    # Lane-dense edge tiles: multiple of 128, <= 4096.  Clamp so the grid has
    # >= 2 steps when possible (v7x's two TensorCores split the "parallel"
    # axis; a single-step grid idles one of them).
    tile_edges = max(128, min(int(tile_edges), 4096))
    tile_edges = (tile_edges // 128) * 128
    if E > 128:
        half_e = ((pl.cdiv(E, 2) + 127) // 128) * 128
        tile_edges = min(tile_edges, half_e)
    num_tiles = pl.cdiv(E, tile_edges)
    e_pad = num_tiles * tile_edges

    # Pad edges to the tile multiple with VALID indices (node 0); padded rows
    # are computed and then discarded in the wrapper.
    src = edge_index[0].astype(jnp.int32)
    dst = edge_index[1].astype(jnp.int32)
    src_p = jnp.pad(src, (0, e_pad - E)).reshape(1, e_pad)
    # dst is pre-offset by +N so its one-hot lands in rows [N, 2N).
    dsto_p = (jnp.pad(dst, (0, e_pad - E)) + n_nodes).reshape(1, e_pad)

    # Fold Linear1 into the node features (done once, in XLA, f32 accum):
    #   h1^T = W1a^T @ nf[src]^T + W1b^T @ nf[dst]^T + b1 = [A_src | A_dst] @ oh + b1
    nf_t = node_features.astype(jnp.float32).T                         # (nd, N)
    a_src = w1[:node_dim, :].astype(jnp.float32).T @ nf_t              # (hidden, N)
    a_dst = w1[node_dim:, :].astype(jnp.float32).T @ nf_t              # (hidden, N)
    a_cat = jnp.concatenate([a_src, a_dst], axis=1).astype(jnp.bfloat16)  # (hidden, 2N)

    w2_t = w2.T.astype(jnp.bfloat16)                                   # (half, hidden)
    b1c = b1.reshape(hidden, 1).astype(jnp.float32)
    b2c = b2.reshape(half, 1).astype(jnp.float32)
    w3c = w3.reshape(half, 1).astype(jnp.float32)
    b3c = b3.reshape(1, 1).astype(jnp.float32)

    # Grid-invariant operands: whole-array, single-buffered VMEM residents
    # (no double-buffering of constant blocks).
    vmem = pl.BlockSpec(memory_space=pltpu.MemorySpace.VMEM)

    # NOTE: at TE=4096 re-check the bundle dump for vreg spills in the one-hot
    # build; if needed, chunk the tile with an unrolled inner fori_loop.
    out = pl.pallas_call(
        _edge_mlp_kernel,
        out_shape=jax.ShapeDtypeStruct((1, e_pad), jnp.float32),
        grid=(num_tiles,),
        in_specs=[
            pl.BlockSpec((1, tile_edges), lambda i: (0, i)),   # src
            pl.BlockSpec((1, tile_edges), lambda i: (0, i)),   # dst (+N offset)
            vmem,                                              # A = [A_src | A_dst]
            vmem,                                              # b1
            vmem,                                              # W2^T
            vmem,                                              # b2
            vmem,                                              # w3 column
            vmem,                                              # b3
        ],
        out_specs=pl.BlockSpec((1, tile_edges), lambda i: (0, i)),
        compiler_params=pltpu.CompilerParams(
            dimension_semantics=("parallel",),
            vmem_limit_bytes=_vmem_limit_bytes()),
    )(src_p, dsto_p, a_cat, b1c, w2_t, b2c, w3c, b3c)

    # (1, e_pad) lane-dense slab -> [E, 1] like the PyTorch module.
    return out.reshape(-1)[:E].reshape(E, 1)


def init_params(node_dim, hidden_dim, key):
    """Deterministic synthetic parameters matching nn.Linear shapes.

    PyTorch nn.Linear(in, out) holds weight [out, in]; we store the transposed
    [in, out] form so the reference does x @ W directly.
    """
    k1, k2, k3, k4, k5, k6 = jax.random.split(key, 6)
    half = hidden_dim // 2
    w1 = jax.random.normal(k1, (2 * node_dim, hidden_dim), jnp.float32) * 0.1
    b1 = jax.random.normal(k2, (hidden_dim,), jnp.float32) * 0.1
    w2 = jax.random.normal(k3, (hidden_dim, half), jnp.float32) * 0.1
    b2 = jax.random.normal(k4, (half,), jnp.float32) * 0.1
    w3 = jax.random.normal(k5, (half, 1), jnp.float32) * 0.1
    b3 = jax.random.normal(k6, (1,), jnp.float32) * 0.1
    return (w1, b1, w2, b2, w3, b3)


def edge_predictor_ref(node_features, edge_index, params):
    """Pure-JAX f32 reference for correctness checking."""
    w1, b1, w2, b2, w3, b3 = params
    src, dst = edge_index[0], edge_index[1]
    x = jnp.concatenate([node_features[src], node_features[dst]], axis=1)
    h = jnp.maximum(x @ w1 + b1, 0.0)
    h = jnp.maximum(h @ w2 + b2, 0.0)
    return jax.nn.sigmoid(h @ w3 + b3)


if __name__ == "__main__":
    key = jax.random.PRNGKey(0)
    k_nodes, k_src, k_dst, k_params = jax.random.split(key, 4)

    node_dim = 16
    hidden_dim = 32
    num_nodes = 64
    num_edges = 2000   # not a tile multiple: exercises padding + a 2-step grid

    node_features = jax.random.normal(
        k_nodes, (num_nodes, node_dim), jnp.float32)
    src = jax.random.randint(k_src, (num_edges,), 0, num_nodes, jnp.int32)
    dst = jax.random.randint(k_dst, (num_edges,), 0, num_nodes, jnp.int32)
    edge_index = jnp.stack([src, dst], axis=0)

    params = init_params(node_dim, hidden_dim, k_params)

    out = edge_predictor_pallas(node_features, edge_index, params)
    out = jax.block_until_ready(out)

    ref = edge_predictor_ref(node_features, edge_index, params)
    assert out.shape == (num_edges, 1), out.shape
    # bf16 MXU inputs (f32 accumulation) -> loosened tolerance vs f32 ref.
    assert jnp.allclose(out, ref, atol=2e-2, rtol=0.0), (
        float(jnp.max(jnp.abs(out - ref))))

    print("KERNEL_OK")
</pallas_src>

<mosaic_0001>
module attributes {stable_mosaic.version = 11 : i64} {
  func.func @_edge_mlp_kernel(%arg0: i32, %arg1: memref<1x1024xi32, #tpu.memory_space<vmem>>, %arg2: memref<1x1024xi32, #tpu.memory_space<vmem>>, %arg3: memref<32x128xbf16, #tpu.memory_space<vmem>>, %arg4: memref<32x1xf32, #tpu.memory_space<vmem>>, %arg5: memref<16x32xbf16, #tpu.memory_space<vmem>>, %arg6: memref<16x1xf32, #tpu.memory_space<vmem>>, %arg7: memref<16x1xf32, #tpu.memory_space<vmem>>, %arg8: memref<1x1xf32, #tpu.memory_space<vmem>>, %arg9: memref<1x1024xf32, #tpu.memory_space<vmem>>) attributes {dimension_semantics = [#tpu.dimension_semantics<parallel>], iteration_bounds = array<i64: 2>, scalar_prefetch = 0 : i64, scratch_operands = 0 : i64, tpu.core_type = #tpu.core_type<tc>, window_params = [{transform_indices = @transform_0, window_bounds = array<i64: 1, 1024>}, {transform_indices = @transform_1, window_bounds = array<i64: 1, 1024>}, {pipeline_mode = #tpu.pipeline_mode<synchronous>, transform_indices = @transform_2, window_bounds = array<i64: 32, 128>}, {pipeline_mode = #tpu.pipeline_mode<synchronous>, transform_indices = @transform_3, window_bounds = array<i64: 32, 1>}, {pipeline_mode = #tpu.pipeline_mode<synchronous>, transform_indices = @transform_4, window_bounds = array<i64: 16, 32>}, {pipeline_mode = #tpu.pipeline_mode<synchronous>, transform_indices = @transform_5, window_bounds = array<i64: 16, 1>}, {pipeline_mode = #tpu.pipeline_mode<synchronous>, transform_indices = @transform_6, window_bounds = array<i64: 16, 1>}, {pipeline_mode = #tpu.pipeline_mode<synchronous>, transform_indices = @transform_7, window_bounds = array<i64: 1, 1>}, {transform_indices = @transform_8, window_bounds = array<i64: 1, 1024>}]} {
    %c0 = arith.constant 0 : index
    %c0_0 = arith.constant 0 : index
    %0 = vector.load %arg1[%c0, %c0_0] : memref<1x1024xi32, #tpu.memory_space<vmem>>, vector<1x1024xi32>
    %c0_1 = arith.constant 0 : index
    %c0_2 = arith.constant 0 : index
    %1 = vector.load %arg2[%c0_1, %c0_2] : memref<1x1024xi32, #tpu.memory_space<vmem>>, vector<1x1024xi32>
    %2 = tpu.iota {dimensions = array<i32: 0>} : vector<128x1xi32>
    %3 = vector.broadcast %2 : vector<128x1xi32> to vector<128x1024xi32>
    %4 = vector.broadcast %0 : vector<1x1024xi32> to vector<128x1024xi32>
    %5 = arith.cmpi eq, %3, %4 : vector<128x1024xi32>
    %6 = vector.broadcast %2 : vector<128x1xi32> to vector<128x1024xi32>
    %7 = vector.broadcast %1 : vector<1x1024xi32> to vector<128x1024xi32>
    %8 = arith.cmpi eq, %6, %7 : vector<128x1024xi32>
    %9 = arith.ori %5, %8 : vector<128x1024xi1>
    %10 = arith.extui %9 : vector<128x1024xi1> to vector<128x1024xi32>
    %11 = arith.sitofp %10 : vector<128x1024xi32> to vector<128x1024xf32>
    %12 = arith.truncf %11 : vector<128x1024xf32> to vector<128x1024xbf16>
    %c0_3 = arith.constant 0 : index
    %c0_4 = arith.constant 0 : index
    %13 = vector.load %arg3[%c0_3, %c0_4] : memref<32x128xbf16, #tpu.memory_space<vmem>>, vector<32x128xbf16>
    %cst = arith.constant dense<0.000000e+00> : vector<32x1024xf32>
    %14 = tpu.matmul %13, %12, %cst {dimension_numbers = #tpu.dot_dimension_numbers<[1], [0], [0], [1], [0, 0, 1, 1], [], []>} : vector<32x128xbf16>, vector<128x1024xbf16>, vector<32x1024xf32> -> vector<32x1024xf32>
    %c0_5 = arith.constant 0 : index
    %c0_6 = arith.constant 0 : index
    %15 = vector.load %arg4[%c0_5, %c0_6] : memref<32x1xf32, #tpu.memory_space<vmem>>, vector<32x1xf32>
    %16 = vector.broadcast %15 : vector<32x1xf32> to vector<32x1024xf32>
    %17 = arith.addf %14, %16 : vector<32x1024xf32>
    %cst_7 = arith.constant 0.000000e+00 : f32
    %18 = vector.broadcast %cst_7 : f32 to vector<32x1024xf32>
    %19 = arith.maximumf %17, %18 : vector<32x1024xf32>
    %20 = arith.truncf %19 : vector<32x1024xf32> to vector<32x1024xbf16>
    %c0_8 = arith.constant 0 : index
    %c0_9 = arith.constant 0 : index
    %21 = vector.load %arg5[%c0_8, %c0_9] : memref<16x32xbf16, #tpu.memory_space<vmem>>, vector<16x32xbf16>
    %cst_10 = arith.constant dense<0.000000e+00> : vector<16x1024xf32>
    %22 = tpu.matmul %21, %20, %cst_10 {dimension_numbers = #tpu.dot_dimension_numbers<[1], [0], [0], [1], [0, 0, 1, 1], [], []>} : vector<16x32xbf16>, vector<32x1024xbf16>, vector<16x1024xf32> -> vector<16x1024xf32>
    %c0_11 = arith.constant 0 : index
    %c0_12 = arith.constant 0 : index
    %23 = vector.load %arg6[%c0_11, %c0_12] : memref<16x1xf32, #tpu.memory_space<vmem>>, vector<16x1xf32>
    %24 = vector.broadcast %23 : vector<16x1xf32> to vector<16x1024xf32>
    %25 = arith.addf %22, %24 : vector<16x1024xf32>
    %cst_13 = arith.constant 0.000000e+00 : f32
    %26 = vector.broadcast %cst_13 : f32 to vector<16x1024xf32>
    %27 = arith.maximumf %25, %26 : vector<16x1024xf32>
    %c0_14 = arith.constant 0 : index
    %c0_15 = arith.constant 0 : index
    %28 = vector.load %arg7[%c0_14, %c0_15] : memref<16x1xf32, #tpu.memory_space<vmem>>, vector<16x1xf32>
    %29 = vector.broadcast %28 : vector<16x1xf32> to vector<16x1024xf32>
    %30 = arith.mulf %27, %29 : vector<16x1024xf32>
    %cst_16 = arith.constant dense<0.000000e+00> : vector<1024xf32>
    %31 = vector.multi_reduction <add>, %30, %cst_16 [0] : vector<16x1024xf32> to vector<1024xf32>
    %32 = vector.shape_cast %31 : vector<1024xf32> to vector<1x1024xf32>
    %c0_17 = arith.constant 0 : index
    %c0_18 = arith.constant 0 : index
    %33 = vector.load %arg8[%c0_17, %c0_18] : memref<1x1xf32, #tpu.memory_space<vmem>>, vector<1x1xf32>
    %34 = vector.broadcast %33 : vector<1x1xf32> to vector<1x1024xf32>
    %35 = arith.addf %32, %34 : vector<1x1024xf32>
    %36 = arith.negf %35 : vector<1x1024xf32>
    %37 = math.exp %36 : vector<1x1024xf32>
    %cst_19 = arith.constant 1.000000e+00 : f32
    %38 = vector.broadcast %cst_19 : f32 to vector<1x1024xf32>
    %39 = arith.addf %38, %37 : vector<1x1024xf32>
    %40 = arith.divf %38, %39 : vector<1x1024xf32>
    %c0_20 = arith.constant 0 : index
    %c0_21 = arith.constant 0 : index
    %41 = vector.load %arg9[%c0_20, %c0_21] : memref<1x1024xf32, #tpu.memory_space<vmem>>, vector<1x1024xf32>
    tpu.vector_store %arg9[%c0_20, %c0_21], %40 {strides = array<i32>} : memref<1x1024xf32, #tpu.memory_space<vmem>>, vector<1x1024xf32>,
    return
  }
  func.func @transform_0(%arg0: i32) -> (i32, i32) {
    %c0_i32 = arith.constant 0 : i32
    %c0_i32_0 = arith.constant 0 : i32
    return %c0_i32, %arg0 : i32, i32
  }
  func.func @transform_1(%arg0: i32) -> (i32, i32) {
    %c0_i32 = arith.constant 0 : i32
    %c0_i32_0 = arith.constant 0 : i32
    return %c0_i32, %arg0 : i32, i32
  }
  func.func @transform_2(%arg0: i32) -> (i32, i32) {
    %c0_i32 = arith.constant 0 : i32
    %c0_i32_0 = arith.constant 0 : i32
    %c0_i32_1 = arith.constant 0 : i32
    return %c0_i32, %c0_i32_0 : i32, i32
  }
  func.func @transform_3(%arg0: i32) -> (i32, i32) {
    %c0_i32 = arith.constant 0 : i32
    %c0_i32_0 = arith.constant 0 : i32
    %c0_i32_1 = arith.constant 0 : i32
    return %c0_i32, %c0_i32_0 : i32, i32
  }
  func.func @transform_4(%arg0: i32) -> (i32, i32) {
    %c0_i32 = arith.constant 0 : i32
    %c0_i32_0 = arith.constant 0 : i32
    %c0_i32_1 = arith.constant 0 : i32
    return %c0_i32, %c0_i32_0 : i32, i32
  }
  func.func @transform_5(%arg0: i32) -> (i32, i32) {
    %c0_i32 = arith.constant 0 : i32
    %c0_i32_0 = arith.constant 0 : i32
    %c0_i32_1 = arith.constant 0 : i32
    return %c0_i32, %c0_i32_0 : i32, i32
  }
  func.func @transform_6(%arg0: i32) -> (i32, i32) {
    %c0_i32 = arith.constant 0 : i32
    %c0_i32_0 = arith.constant 0 : i32
    %c0_i32_1 = arith.constant 0 : i32
    return %c0_i32, %c0_i32_0 : i32, i32
  }
  func.func @transform_7(%arg0: i32) -> (i32, i32) {
    %c0_i32 = arith.constant 0 : i32
    %c0_i32_0 = arith.constant 0 : i32
    %c0_i32_1 = arith.constant 0 : i32
    return %c0_i32, %c0_i32_0 : i32, i32
  }
  func.func @transform_8(%arg0: i32) -> (i32, i32) {
    %c0_i32 = arith.constant 0 : i32
    %c0_i32_0 = arith.constant 0 : i32
    return %c0_i32, %arg0 : i32, i32
  }
}

</mosaic_0001>

<llo_original>
// kernel: tpu_custom_call.1
$region0: #{tpu_custom_call.1}
  #allocation0 [shape = 'u32[]', space=smem, size = 0x4, offset = 0x4, fixed_abs, tag = 'smem constant byte address 0x4 - core index']
  #allocation1 [shape = 'u32[144,128]{1,0:T(1,128)}', space=vmem, size = 0x12000, scoped, tag = 'internal scratch']
  #allocation2 [shape = 'f32[1,1]{1,0:T(1,128)S(1)}', space=vmem, size = 0x200, scoped, tag = 'scoped memory for tpu_custom_call.1']
  %s0 = inlined_call_operand.vmem [shape: s32[1,2048], index: 0, kind: input, shape index: {}]
  %s1 = inlined_call_operand.vmem [shape: s32[1,2048], index: 1, kind: input, shape index: {}]
  %s2 = inlined_call_operand.vmem [shape: bf16[32,128], index: 2, kind: input, shape index: {}]
  %s3 = inlined_call_operand.vmem [shape: f32[32,1], index: 3, kind: input, shape index: {}]
  %s4 = inlined_call_operand.vmem [shape: bf16[16,32], index: 4, kind: input, shape index: {}]
  %s5 = inlined_call_operand.vmem [shape: f32[16,1], index: 5, kind: input, shape index: {}]
  %s6 = inlined_call_operand.vmem [shape: f32[16,1], index: 6, kind: input, shape index: {}]
  %s7 = inlined_call_operand.<no memory space> [shape: f32[1,1], index: 7, kind: input, shape index: {}]
  %s8 = inlined_call_operand.hbm [shape: f32[1,2048], index: 8, kind: output, shape index: {}]
  %s9 = sld [smem:[#allocation0]]
  $region65: #{tpu_custom_call.1} parent=0
    _
  %s11 = ssub.s32 1, %s9
  %s12 = scalar_select 0, %s11, %s9
  %v13 = vstv %s7
  %14 = vst [vmem:[#allocation2] sm:$0x1] %v13
  $region1: #{tpu_custom_call.1} parent=0
    #allocation3 [shape = 'u8[8192]{0}', space=vmem, size = 0x2000, scoped, tag = 'output window, operand 0']
    #allocation4 [shape = 's32[2]{0}', space=sflag, size = 0x8, scoped, tag = 'scoped memory for tpu_custom_call.1']
    %15 = vsyncpa [#allocation4], 0
    %s16 = scalar_lea.sflag [#allocation4], 1
    %17 = vsyncpa %s16, 0
    loop: start=0, step=1, limit=4
    $region2: #{tpu_custom_call.1} parent=1 // loop_pre_header
      _
    $region3: #{tpu_custom_call.1} parent=1 // loop_header
      %s19 = sphi 0, %s23
      %p20 = scmp.ge.s32.totalorder %s19, 4
      %s29 = sphi 0, %s31
      %s32 = sphi 0, %s29
      %s33 = sphi 0, %s32
      %s49 = sphi 0, %s33
      %s55 = sphi 0, %s57
      %s58 = sphi 0, %s55
      %s59 = sphi 0, %s58
      %s75 = sphi 0, %s59
      %s79 = sphi 0, %s79
      %s81 = sphi 0, %s79
      %s82 = sphi 0, %s81
      %s96 = sphi 0, %s82
      %s100 = sphi 0, %s100
      %s102 = sphi 0, %s100
      %s103 = sphi 0, %s102
      %s117 = sphi 0, %s103
      %s121 = sphi 0, %s121
      %s123 = sphi 0, %s121
      %s124 = sphi 0, %s123
      %s138 = sphi 0, %s124
      %s142 = sphi 0, %s142
      %s144 = sphi 0, %s142
      %s145 = sphi 0, %s144
      %s159 = sphi 0, %s145
      %s163 = sphi 0, %s163
      %s165 = sphi 0, %s163
      %s166 = sphi 0, %s165
      %s180 = sphi 0, %s166
      %s184 = sphi 0, %s184
      %s186 = sphi 0, %s184
      %s187 = sphi 0, %s186
      %s201 = sphi 0, %s187
      %s207 = sphi 0, %s209
      %s210 = sphi 0, %s207
      %s211 = sphi 0, %s210
      %s227 = sphi 0, %s211
    $region4: #{tpu_custom_call.1} parent=1 // loop_header_branch
      %22 = sbr.rel (%p20) target = $region8
    $region5: #{tpu_custom_call.1} parent=1 // loop_body
      %s24 = ssub.s32 %s19, 1
      %s25 = ssub.s32 %s19, 2
      %s26 = sadd.s32 %s19, 1
      %s27 = ssub.s32 %s19, %s26
      %p28 = scmp.eq.s32.totalorder %s27, 0
      %s30 = sadd.s32 %s29, 1
      %s31 = scalar_select %p28, %s29, %s30
      %p34 = pneg %p28
      %p35 = scmp.eq.s32.totalorder %s19, 1
      %p36 = por %p34, %p35
      %p37 = scmp.ne.s32.totalorder %s29, %s32
      %p38 = scmp.eq.s32.totalorder %s19, 0
      %p39 = por %p37, %p38
      %p40 = scmp.ne.s32.totalorder %s29, %s32
      %p41 = scmp.eq.s32.totalorder %s24, 1
      %p42 = por %p40, %p41
      %p43 = scmp.ne.s32.totalorder %s32, %s33
      %p44 = scmp.eq.s32.totalorder %s24, 0
      %p45 = por %p43, %p44
      %p46 = scmp.ne.s32.totalorder %s32, %s33
      %p47 = scmp.eq.s32.totalorder %s25, 1
      %p48 = por %p46, %p47
      %p50 = scmp.ne.s32.totalorder %s33, %s49
      %p51 = scmp.eq.s32.totalorder %s25, 0
      %p52 = por %p50, %p51
      %s53 = ssub.s32 %s19, %s26
      %p54 = scmp.eq.s32.totalorder %s53, 0
      %s56 = sadd.s32 %s55, 1
      %s57 = scalar_select %p54, %s55, %s56
      %p60 = pneg %p54
      %p61 = scmp.eq.s32.totalorder %s19, 1
      %p62 = por %p60, %p61
      %p63 = scmp.ne.s32.totalorder %s55, %s58
      %p64 = scmp.eq.s32.totalorder %s19, 0
      %p65 = por %p63, %p64
      %p66 = scmp.ne.s32.totalorder %s55, %s58
      %p67 = scmp.eq.s32.totalorder %s24, 1
      %p68 = por %p66, %p67
      %p69 = scmp.ne.s32.totalorder %s58, %s59
      %p70 = scmp.eq.s32.totalorder %s24, 0
      %p71 = por %p69, %p70
      %p72 = scmp.ne.s32.totalorder %s58, %s59
      %p73 = scmp.eq.s32.totalorder %s25, 1
      %p74 = por %p72, %p73
      %p76 = scmp.ne.s32.totalorder %s59, %s75
      %p77 = scmp.eq.s32.totalorder %s25, 0
      %p78 = por %p76, %p77
      %s80 = sadd.s32 %s79, 1
      %p83 = scmp.eq.s32.totalorder %s19, 1
      %p84 = scmp.ne.s32.totalorder %s79, %s81
      %p85 = scmp.eq.s32.totalorder %s19, 0
      %p86 = por %p84, %p85
      %p87 = scmp.ne.s32.totalorder %s79, %s81
      %p88 = scmp.eq.s32.totalorder %s24, 1
      %p89 = por %p87, %p88
      %p90 = scmp.ne.s32.totalorder %s81, %s82
      %p91 = scmp.eq.s32.totalorder %s24, 0
      %p92 = por %p90, %p91
      %p93 = scmp.ne.s32.totalorder %s81, %s82
      %p94 = scmp.eq.s32.totalorder %s25, 1
      %p95 = por %p93, %p94
      %p97 = scmp.ne.s32.totalorder %s82, %s96
      %p98 = scmp.eq.s32.totalorder %s25, 0
      %p99 = por %p97, %p98
      %s101 = sadd.s32 %s100, 1
      %p104 = scmp.eq.s32.totalorder %s19, 1
      %p105 = scmp.ne.s32.totalorder %s100, %s102
      %p106 = scmp.eq.s32.totalorder %s19, 0
      %p107 = por %p105, %p106
      %p108 = scmp.ne.s32.totalorder %s100, %s102
      %p109 = scmp.eq.s32.totalorder %s24, 1
      %p110 = por %p108, %p109
      %p111 = scmp.ne.s32.totalorder %s102, %s103
      %p112 = scmp.eq.s32.totalorder %s24, 0
      %p113 = por %p111, %p112
      %p114 = scmp.ne.s32.totalorder %s102, %s103
      %p115 = scmp.eq.s32.totalorder %s25, 1
      %p116 = por %p114, %p115
      %p118 = scmp.ne.s32.totalorder %s103, %s117
      %p119 = scmp.eq.s32.totalorder %s25, 0
      %p120 = por %p118, %p119
      %s122 = sadd.s32 %s121, 1
      %p125 = scmp.eq.s32.totalorder %s19, 1
      %p126 = scmp.ne.s32.totalorder %s121, %s123
      %p127 = scmp.eq.s32.totalorder %s19, 0
      %p128 = por %p126, %p127
      %p129 = scmp.ne.s32.totalorder %s121, %s123
      %p130 = scmp.eq.s32.totalorder %s24, 1
      %p131 = por %p129, %p130
      %p132 = scmp.ne.s32.totalorder %s123, %s124
      %p133 = scmp.eq.s32.totalorder %s24, 0
      %p134 = por %p132, %p133
      %p135 = scmp.ne.s32.totalorder %s123, %s124
      %p136 = scmp.eq.s32.totalorder %s25, 1
      %p137 = por %p135, %p136
      %p139 = scmp.ne.s32.totalorder %s124, %s138
      %p140 = scmp.eq.s32.totalorder %s25, 0
      %p141 = por %p139, %p140
      %s143 = sadd.s32 %s142, 1
      %p146 = scmp.eq.s32.totalorder %s19, 1
      %p147 = scmp.ne.s32.totalorder %s142, %s144
      %p148 = scmp.eq.s32.totalorder %s19, 0
      %p149 = por %p147, %p148
      %p150 = scmp.ne.s32.totalorder %s142, %s144
      %p151 = scmp.eq.s32.totalorder %s24, 1
      %p152 = por %p150, %p151
      %p153 = scmp.ne.s32.totalorder %s144, %s145
      %p154 = scmp.eq.s32.totalorder %s24, 0
      %p155 = por %p153, %p154
      %p156 = scmp.ne.s32.totalorder %s144, %s145
      %p157 = scmp.eq.s32.totalorder %s25, 1
      %p158 = por %p156, %p157
      %p160 = scmp.ne.s32.totalorder %s145, %s159
      %p161 = scmp.eq.s32.totalorder %s25, 0
      %p162 = por %p160, %p161
      %s164 = sadd.s32 %s163, 1
      %p167 = scmp.eq.s32.totalorder %s19, 1
      %p168 = scmp.ne.s32.totalorder %s163, %s165
      %p169 = scmp.eq.s32.totalorder %s19, 0
      %p170 = por %p168, %p169
      %p171 = scmp.ne.s32.totalorder %s163, %s165
      %p172 = scmp.eq.s32.totalorder %s24, 1
      %p173 = por %p171, %p172
      %p174 = scmp.ne.s32.totalorder %s165, %s166
      %p175 = scmp.eq.s32.totalorder %s24, 0
      %p176 = por %p174, %p175
      %p177 = scmp.ne.s32.totalorder %s165, %s166
      %p178 = scmp.eq.s32.totalorder %s25, 1
      %p179 = por %p177, %p178
      %p181 = scmp.ne.s32.totalorder %s166, %s180
      %p182 = scmp.eq.s32.totalorder %s25, 0
      %p183 = por %p181, %p182
      %s185 = sadd.s32 %s184, 1
      %p188 = scmp.eq.s32.totalorder %s19, 1
      %p189 = scmp.ne.s32.totalorder %s184, %s186
      %p190 = scmp.eq.s32.totalorder %s19, 0
      %p191 = por %p189, %p190
      %p192 = scmp.ne.s32.totalorder %s184, %s186
      %p193 = scmp.eq.s32.totalorder %s24, 1
      %p194 = por %p192, %p193
      %p195 = scmp.ne.s32.totalorder %s186, %s187
      %p196 = scmp.eq.s32.totalorder %s24, 0
      %p197 = por %p195, %p196
      %p198 = scmp.ne.s32.totalorder %s186, %s187
      %p199 = scmp.eq.s32.totalorder %s25, 1
      %p200 = por %p198, %p199
      %p202 = scmp.ne.s32.totalorder %s187, %s201
      %p203 = scmp.eq.s32.totalorder %s25, 0
      %p204 = por %p202, %p203
      %s205 = ssub.s32 %s19, %s26
      %p206 = scmp.eq.s32.totalorder %s205, 0
      %s208 = sadd.s32 %s207, 1
      %s209 = scalar_select %p206, %s207, %s208
      %p212 = pneg %p206
      %p213 = scmp.eq.s32.totalorder %s19, 1
      %p214 = por %p212, %p213
      %p215 = scmp.ne.s32.totalorder %s207, %s210
      %p216 = scmp.eq.s32.totalorder %s19, 0
      %p217 = por %p215, %p216
      %p218 = scmp.ne.s32.totalorder %s207, %s210
      %p219 = scmp.eq.s32.totalorder %s24, 1
      %p220 = por %p218, %p219
      %p221 = scmp.ne.s32.totalorder %s210, %s211
      %p222 = scmp.eq.s32.totalorder %s24, 0
      %p223 = por %p221, %p222
      %p224 = scmp.ne.s32.totalorder %s210, %s211
      %p225 = scmp.eq.s32.totalorder %s25, 1
      %p226 = por %p224, %p225
      %p228 = scmp.ne.s32.totalorder %s211, %s227
      %p229 = scmp.eq.s32.totalorder %s25, 0
      %p230 = por %p228, %p229
      %p231 = scmp.le.s32.totalorder 1, %s19
      %p232 = scmp.lt.s32.totalorder %s19, 3
      %p233 = pnand %p231, %p232
      %p234 = pneg %p233
      // Predicated region
      $region9: #{tpu_custom_call.1} parent=5 // pred_check
        _
      $region10: #{tpu_custom_call.1} parent=5 // pred_check_branch
        %236 = sbr.rel (%p233) target = $region12
      $region11: #{tpu_custom_call.1} parent=5 // pred_region
        %s237 = ssub.s32 %s19, 1
        // Predicated region
        $region13: #{tpu_custom_call.1} parent=11 // pred_check
          %p238 = pneg %p92
        $region14: #{tpu_custom_call.1} parent=11 // pred_check_branch
          %240 = sbr.rel (%p238) target = $region16
        $region15: #{tpu_custom_call.1} parent=11 // pred_region
          _
        $region16: #{tpu_custom_call.1} parent=11 // pred_fallthru
          _
        // Predicated region
        $region17: #{tpu_custom_call.1} parent=11 // pred_check
          %p241 = pneg %p113
        $region18: #{tpu_custom_call.1} parent=11 // pred_check_branch
          %243 = sbr.rel (%p241) target = $region20
        $region19: #{tpu_custom_call.1} parent=11 // pred_region
          _
        $region20: #{tpu_custom_call.1} parent=11 // pred_fallthru
          _
        // Predicated region
        $region21: #{tpu_custom_call.1} parent=11 // pred_check
          %p244 = pneg %p134
        $region22: #{tpu_custom_call.1} parent=11 // pred_check_branch
          %246 = sbr.rel (%p244) target = $region24
        $region23: #{tpu_custom_call.1} parent=11 // pred_region
          _
        $region24: #{tpu_custom_call.1} parent=11 // pred_fallthru
          _
        // Predicated region
        $region25: #{tpu_custom_call.1} parent=11 // pred_check
          %p247 = pneg %p155
        $region26: #{tpu_custom_call.1} parent=11 // pred_check_branch
          %249 = sbr.rel (%p247) target = $region28
        $region27: #{tpu_custom_call.1} parent=11 // pred_region
          _
        $region28: #{tpu_custom_call.1} parent=11 // pred_fallthru
          _
        // Predicated region
        $region29: #{tpu_custom_call.1} parent=11 // pred_check
          %p250 = pneg %p176
        $region30: #{tpu_custom_call.1} parent=11 // pred_check_branch
          %252 = sbr.rel (%p250) target = $region32
        $region31: #{tpu_custom_call.1} parent=11 // pred_region
          _
        $region32: #{tpu_custom_call.1} parent=11 // pred_fallthru
          _
        // Predicated region
        $region33: #{tpu_custom_call.1} parent=11 // pred_check
          %p253 = pneg %p197
        $region34: #{tpu_custom_call.1} parent=11 // pred_check_branch
          %255 = sbr.rel (%p253) target = $region36
        $region35: #{tpu_custom_call.1} parent=11 // pred_region
          _
        $region36: #{tpu_custom_call.1} parent=11 // pred_fallthru
          _
      $region12: #{tpu_custom_call.1} parent=5 // pred_fallthru
        _
      %p256 = scmp.lt.s32.totalorder %s19, 2
      // Predicated region
      $region37: #{tpu_custom_call.1} parent=5 // pred_check
        %p257 = pneg %p256
      $region38: #{tpu_custom_call.1} parent=5 // pred_check_branch
        %259 = sbr.rel (%p257) target = $region40
      $region39: #{tpu_custom_call.1} parent=5 // pred_region
        // Predicated region
        $region41: #{tpu_custom_call.1} parent=39 // pred_check
          %p260 = pneg %p39
        $region42: #{tpu_custom_call.1} parent=39 // pred_check_branch
          %262 = sbr.rel (%p260) target = $region44
        $region43: #{tpu_custom_call.1} parent=39 // pred_region
          %s263 = smul.u32 8, %s19
          %p264 = scmp.lt.s32.totalorder %s263, 15
          %s265 = scalar_select %p264, %s263, 15
          %s266 = scalar_lea.vmem %s0, %s265
          %s267 = smul.u32 8, %s19
        $region44: #{tpu_custom_call.1} parent=39 // pred_fallthru
          _
        // Predicated region
        $region45: #{tpu_custom_call.1} parent=39 // pred_check
          %p268 = pneg %p65
        $region46: #{tpu_custom_call.1} parent=39 // pred_check_branch
          %270 = sbr.rel (%p268) target = $region48
        $region47: #{tpu_custom_call.1} parent=39 // pred_region
          %s271 = smul.u32 8, %s19
          %p272 = scmp.lt.s32.totalorder %s271, 15
          %s273 = scalar_select %p272, %s271, 15
          %s274 = scalar_lea.vmem %s1, %s273
          %s275 = smul.u32 8, %s19
        $region48: #{tpu_custom_call.1} parent=39 // pred_fallthru
          _
      $region40: #{tpu_custom_call.1} parent=5 // pred_fallthru
        _
      %p276 = scmp.le.s32.totalorder 1, %s19
      %p277 = scmp.lt.s32.totalorder %s19, 3
      %p278 = pnand %p276, %p277
      %p279 = pneg %p278
      // Predicated region
      $region49: #{tpu_custom_call.1} parent=5 // pred_check
        _
      $region50: #{tpu_custom_call.1} parent=5 // pred_check_branch
        %281 = sbr.rel (%p278) target = $region52
      $region51: #{tpu_custom_call.1} parent=5 // pred_region
        %s282 = ssub.s32 %s19, 1
        %s283 = smul.u32 8, %s24
        %p284 = scmp.lt.s32.totalorder %s283, 15
        %s285 = scalar_select %p284, %s283, 15
        %s286 = scalar_lea.vmem %s0, %s285
        %p287 = pneg %p45
        %p288 = pneg %p42
        %s289 = smul.u32 8, %s24
        %p290 = scmp.lt.s32.totalorder %s289, 15
        %s291 = scalar_select %p290, %s289, 15
        %s292 = scalar_lea.vmem %s1, %s291
        %p293 = pneg %p71
        %p294 = pneg %p68
        %p295 = pneg %p92
        %p296 = pneg %p89
        %p297 = pneg %p113
        %p298 = pneg %p110
        %p299 = pneg %p134
        %p300 = pneg %p131
        %p301 = pneg %p155
        %p302 = pneg %p152
        %p303 = pneg %p176
        %p304 = pneg %p173
        %p305 = pneg %p197
        %p306 = pneg %p194
        %p307 = pneg %p223
        %p308 = pneg %p220
        %s309 = sand.u32 %s210, 1
        %s310 = scalar_lea.sflag [#allocation4], %s309
        %s311 = sand.u32 %s210, 1
        %s312 = smul.addr %s311, 8
        %s313 = scalar_lea.vmem [#allocation3], %s312
        %s314 = smul.u32 8, %s24
        %p315 = scmp.lt.s32.totalorder %s314, 15
        %s316 = scalar_select %p315, %s314, 15
        %s317 = scalar_lea.vmem %s0, %s316
        %s318 = smul.u32 8, %s24
        %s319 = smul.u32 8, %s24
        %p320 = scmp.lt.s32.totalorder %s319, 15
        %s321 = scalar_select %p320, %s319, 15
        %s322 = scalar_lea.vmem %s1, %s321
        %s323 = smul.u32 8, %s24
        %s324 = smul.u32 8, %s24
        %v326 = vld [vmem:[%s317] sm:$0xff]
        %v327 = vld [vmem:[%s322] sm:$0xff]
        %v328 = vlaneseq
        %v329 = vshrl.u32 %v328, 7
        %v330 = vadd.s32 %v329, 8
        %v331 = vadd.s32 %v329, 16
        %v332 = vadd.s32 %v329, 24
        %v333 = vadd.s32 %v329, 32
        %v334 = vadd.s32 %v329, 40
        %v335 = vadd.s32 %v329, 48
        %v336 = vadd.s32 %v329, 56
        %v337 = vadd.s32 %v329, 64
        %v338 = vadd.s32 %v329, 72
        %v339 = vadd.s32 %v329, 80
        %v340 = vadd.s32 %v329, 88
        %v341 = vadd.s32 %v329, 96
        %v342 = vadd.s32 %v329, 104
        %v343 = vadd.s32 %v329, 112
        %v344 = vadd.s32 %v329, 120
        %v345 = vlaneseq
        %v346 = vshrl.u32 %v345, 7
        %v347 = vsub.s32 0, %v346
        %v348 = vrot.slane %v326, %v347
        %v349 = vlaneseq
        %v350 = vshrl.u32 %v349, 7
        %v351 = vsub.s32 1, %v350
        %v352 = vrot.slane %v326, %v351
        %v353 = vlaneseq
        %v354 = vshrl.u32 %v353, 7
        %v355 = vsub.s32 2, %v354
        %v356 = vrot.slane %v326, %v355
        %v357 = vlaneseq
        %v358 = vshrl.u32 %v357, 7
        %v359 = vsub.s32 3, %v358
        %v360 = vrot.slane %v326, %v359
        %v361 = vlaneseq
        %v362 = vshrl.u32 %v361, 7
        %v363 = vsub.s32 4, %v362
        %v364 = vrot.slane %v326, %v363
        %v365 = vlaneseq
        %v366 = vshrl.u32 %v365, 7
        %v367 = vsub.s32 5, %v366
        %v368 = vrot.slane %v326, %v367
        %v369 = vlaneseq
        %v370 = vshrl.u32 %v369, 7
        %v371 = vsub.s32 6, %v370
        %v372 = vrot.slane %v326, %v371
        %v373 = vlaneseq
        %v374 = vshrl.u32 %v373, 7
        %v375 = vsub.s32 7, %v374
        %v376 = vrot.slane %v326, %v375
        %vm377 = vcmp.eq.s32.totalorder %v329, %v348
        %vm378 = vcmp.eq.s32.totalorder %v329, %v352
        %vm379 = vcmp.eq.s32.totalorder %v329, %v356
        %vm380 = vcmp.eq.s32.totalorder %v329, %v360
        %vm381 = vcmp.eq.s32.totalorder %v329, %v364
        %vm382 = vcmp.eq.s32.totalorder %v329, %v368
        %vm383 = vcmp.eq.s32.totalorder %v329, %v372
        %vm384 = vcmp.eq.s32.totalorder %v329, %v376
        %vm385 = vcmp.eq.s32.totalorder %v330, %v348
        %vm386 = vcmp.eq.s32.totalorder %v330, %v352
        %vm387 = vcmp.eq.s32.totalorder %v330, %v356
        %vm388 = vcmp.eq.s32.totalorder %v330, %v360
        %vm389 = vcmp.eq.s32.totalorder %v330, %v364
        %vm390 = vcmp.eq.s32.totalorder %v330, %v368
        %vm391 = vcmp.eq.s32.totalorder %v330, %v372
        %vm392 = vcmp.eq.s32.totalorder %v330, %v376
        %vm393 = vcmp.eq.s32.totalorder %v331, %v348
        %vm394 = vcmp.eq.s32.totalorder %v331, %v352
        %vm395 = vcmp.eq.s32.totalorder %v331, %v356
        %vm396 = vcmp.eq.s32.totalorder %v331, %v360
        %vm397 = vcmp.eq.s32.totalorder %v331, %v364
        %vm398 = vcmp.eq.s32.totalorder %v331, %v368
        %vm399 = vcmp.eq.s32.totalorder %v331, %v372
        %vm400 = vcmp.eq.s32.totalorder %v331, %v376
        %vm401 = vcmp.eq.s32.totalorder %v332, %v348
        %vm402 = vcmp.eq.s32.totalorder %v332, %v352
        %vm403 = vcmp.eq.s32.totalorder %v332, %v356
        %vm404 = vcmp.eq.s32.totalorder %v332, %v360
        %vm405 = vcmp.eq.s32.totalorder %v332, %v364
        %vm406 = vcmp.eq.s32.totalorder %v332, %v368
        %vm407 = vcmp.eq.s32.totalorder %v332, %v372
        %vm408 = vcmp.eq.s32.totalorder %v332, %v376
        %vm409 = vcmp.eq.s32.totalorder %v333, %v348
        %vm410 = vcmp.eq.s32.totalorder %v333, %v352
        %vm411 = vcmp.eq.s32.totalorder %v333, %v356
        %vm412 = vcmp.eq.s32.totalorder %v333, %v360
        %vm413 = vcmp.eq.s32.totalorder %v333, %v364
        %vm414 = vcmp.eq.s32.totalorder %v333, %v368
        %vm415 = vcmp.eq.s32.totalorder %v333, %v372
        %vm416 = vcmp.eq.s32.totalorder %v333, %v376
        %vm417 = vcmp.eq.s32.totalorder %v334, %v348
        %vm418 = vcmp.eq.s32.totalorder %v334, %v352
        %vm419 = vcmp.eq.s32.totalorder %v334, %v356
        %vm420 = vcmp.eq.s32.totalorder %v334, %v360
        %vm421 = vcmp.eq.s32.totalorder %v334, %v364
        %vm422 = vcmp.eq.s32.totalorder %v334, %v368
        %vm423 = vcmp.eq.s32.totalorder %v334, %v372
        %vm424 = vcmp.eq.s32.totalorder %v334, %v376
        %vm425 = vcmp.eq.s32.totalorder %v335, %v348
        %vm426 = vcmp.eq.s32.totalorder %v335, %v352
        %vm427 = vcmp.eq.s32.totalorder %v335, %v356
        %vm428 = vcmp.eq.s32.totalorder %v335, %v360
        %vm429 = vcmp.eq.s32.totalorder %v335, %v364
        %vm430 = vcmp.eq.s32.totalorder %v335, %v368
        %vm431 = vcmp.eq.s32.totalorder %v335, %v372
        %vm432 = vcmp.eq.s32.totalorder %v335, %v376
        %vm433 = vcmp.eq.s32.totalorder %v336, %v348
        %vm434 = vcmp.eq.s32.totalorder %v336, %v352
        %vm435 = vcmp.eq.s32.totalorder %v336, %v356
        %vm436 = vcmp.eq.s32.totalorder %v336, %v360
        %vm437 = vcmp.eq.s32.totalorder %v336, %v364
        %vm438 = vcmp.eq.s32.totalorder %v336, %v368
        %vm439 = vcmp.eq.s32.totalorder %v336, %v372
        %vm440 = vcmp.eq.s32.totalorder %v336, %v376
        %vm441 = vcmp.eq.s32.totalorder %v337, %v348
        %vm442 = vcmp.eq.s32.totalorder %v337, %v352
        %vm443 = vcmp.eq.s32.totalorder %v337, %v356
        %vm444 = vcmp.eq.s32.totalorder %v337, %v360
        %vm445 = vcmp.eq.s32.totalorder %v337, %v364
        %vm446 = vcmp.eq.s32.totalorder %v337, %v368
        %vm447 = vcmp.eq.s32.totalorder %v337, %v372
        %vm448 = vcmp.eq.s32.totalorder %v337, %v376
        %vm449 = vcmp.eq.s32.totalorder %v338, %v348
        %vm450 = vcmp.eq.s32.totalorder %v338, %v352
        %vm451 = vcmp.eq.s32.totalorder %v338, %v356
        %vm452 = vcmp.eq.s32.totalorder %v338, %v360
        %vm453 = vcmp.eq.s32.totalorder %v338, %v364
        %vm454 = vcmp.eq.s32.totalorder %v338, %v368
        %vm455 = vcmp.eq.s32.totalorder %v338, %v372
        %vm456 = vcmp.eq.s32.totalorder %v338, %v376
        %vm457 = vcmp.eq.s32.totalorder %v339, %v348
        %vm458 = vcmp.eq.s32.totalorder %v339, %v352
        %vm459 = vcmp.eq.s32.totalorder %v339, %v356
        %vm460 = vcmp.eq.s32.totalorder %v339, %v360
        %vm461 = vcmp.eq.s32.totalorder %v339, %v364
        %vm462 = vcmp.eq.s32.totalorder %v339, %v368
        %vm463 = vcmp.eq.s32.totalorder %v339, %v372
        %vm464 = vcmp.eq.s32.totalorder %v339, %v376
        %vm465 = vcmp.eq.s32.totalorder %v340, %v348
        %vm466 = vcmp.eq.s32.totalorder %v340, %v352
        %vm467 = vcmp.eq.s32.totalorder %v340, %v356
        %vm468 = vcmp.eq.s32.totalorder %v340, %v360
        %vm469 = vcmp.eq.s32.totalorder %v340, %v364
        %vm470 = vcmp.eq.s32.totalorder %v340, %v368
        %vm471 = vcmp.eq.s32.totalorder %v340, %v372
        %vm472 = vcmp.eq.s32.totalorder %v340, %v376
        %vm473 = vcmp.eq.s32.totalorder %v341, %v348
        %vm474 = vcmp.eq.s32.totalorder %v341, %v352
        %vm475 = vcmp.eq.s32.totalorder %v341, %v356
        %vm476 = vcmp.eq.s32.totalorder %v341, %v360
        %vm477 = vcmp.eq.s32.totalorder %v341, %v364
        %vm478 = vcmp.eq.s32.totalorder %v341, %v368
        %vm479 = vcmp.eq.s32.totalorder %v341, %v372
        %vm480 = vcmp.eq.s32.totalorder %v341, %v376
        %vm481 = vcmp.eq.s32.totalorder %v342, %v348
        %vm482 = vcmp.eq.s32.totalorder %v342, %v352
        %vm483 = vcmp.eq.s32.totalorder %v342, %v356
        %vm484 = vcmp.eq.s32.totalorder %v342, %v360
        %vm485 = vcmp.eq.s32.totalorder %v342, %v364
        %vm486 = vcmp.eq.s32.totalorder %v342, %v368
        %vm487 = vcmp.eq.s32.totalorder %v342, %v372
        %vm488 = vcmp.eq.s32.totalorder %v342, %v376
        %vm489 = vcmp.eq.s32.totalorder %v343, %v348
        %vm490 = vcmp.eq.s32.totalorder %v343, %v352
        %vm491 = vcmp.eq.s32.totalorder %v343, %v356
        %vm492 = vcmp.eq.s32.totalorder %v343, %v360
        %vm493 = vcmp.eq.s32.totalorder %v343, %v364
        %vm494 = vcmp.eq.s32.totalorder %v343, %v368
        %vm495 = vcmp.eq.s32.totalorder %v343, %v372
        %vm496 = vcmp.eq.s32.totalorder %v343, %v376
        %vm497 = vcmp.eq.s32.totalorder %v344, %v348
        %vm498 = vcmp.eq.s32.totalorder %v344, %v352
        %vm499 = vcmp.eq.s32.totalorder %v344, %v356
        %vm500 = vcmp.eq.s32.totalorder %v344, %v360
        %vm501 = vcmp.eq.s32.totalorder %v344, %v364
        %vm502 = vcmp.eq.s32.totalorder %v344, %v368
        %vm503 = vcmp.eq.s32.totalorder %v344, %v372
        %vm504 = vcmp.eq.s32.totalorder %v344, %v376
        %v505 = vlaneseq
        %v506 = vshrl.u32 %v505, 7
        %v507 = vsub.s32 0, %v506
        %v508 = vrot.slane %v327, %v507
        %v509 = vlaneseq
        %v510 = vshrl.u32 %v509, 7
        %v511 = vsub.s32 1, %v510
        %v512 = vrot.slane %v327, %v511
        %v513 = vlaneseq
        %v514 = vshrl.u32 %v513, 7
        %v515 = vsub.s32 2, %v514
        %v516 = vrot.slane %v327, %v515
        %v517 = vlaneseq
        %v518 = vshrl.u32 %v517, 7
        %v519 = vsub.s32 3, %v518
        %v520 = vrot.slane %v327, %v519
        %v521 = vlaneseq
        %v522 = vshrl.u32 %v521, 7
        %v523 = vsub.s32 4, %v522
        %v524 = vrot.slane %v327, %v523
        %v525 = vlaneseq
        %v526 = vshrl.u32 %v525, 7
        %v527 = vsub.s32 5, %v526
        %v528 = vrot.slane %v327, %v527
        %v529 = vlaneseq
        %v530 = vshrl.u32 %v529, 7
        %v531 = vsub.s32 6, %v530
        %v532 = vrot.slane %v327, %v531
        %v533 = vlaneseq
        %v534 = vshrl.u32 %v533, 7
        %v535 = vsub.s32 7, %v534
        %v536 = vrot.slane %v327, %v535
        %vm537 = vcmp.eq.s32.totalorder %v329, %v508
        %vm538 = vcmp.eq.s32.totalorder %v329, %v512
        %vm539 = vcmp.eq.s32.totalorder %v329, %v516
        %vm540 = vcmp.eq.s32.totalorder %v329, %v520
        %vm541 = vcmp.eq.s32.totalorder %v329, %v524
        %vm542 = vcmp.eq.s32.totalorder %v329, %v528
        %vm543 = vcmp.eq.s32.totalorder %v329, %v532
        %vm544 = vcmp.eq.s32.totalorder %v329, %v536
        %vm545 = vcmp.eq.s32.totalorder %v330, %v508
        %vm546 = vcmp.eq.s32.totalorder %v330, %v512
        %vm547 = vcmp.eq.s32.totalorder %v330, %v516
        %vm548 = vcmp.eq.s32.totalorder %v330, %v520
        %vm549 = vcmp.eq.s32.totalorder %v330, %v524
        %vm550 = vcmp.eq.s32.totalorder %v330, %v528
        %vm551 = vcmp.eq.s32.totalorder %v330, %v532
        %vm552 = vcmp.eq.s32.totalorder %v330, %v536
        %vm553 = vcmp.eq.s32.totalorder %v331, %v508
        %vm554 = vcmp.eq.s32.totalorder %v331, %v512
        %vm555 = vcmp.eq.s32.totalorder %v331, %v516
        %vm556 = vcmp.eq.s32.totalorder %v331, %v520
        %vm557 = vcmp.eq.s32.totalorder %v331, %v524
        %vm558 = vcmp.eq.s32.totalorder %v331, %v528
        %vm559 = vcmp.eq.s32.totalorder %v331, %v532
        %vm560 = vcmp.eq.s32.totalorder %v331, %v536
        %vm561 = vcmp.eq.s32.totalorder %v332, %v508
        %vm562 = vcmp.eq.s32.totalorder %v332, %v512
        %vm563 = vcmp.eq.s32.totalorder %v332, %v516
        %vm564 = vcmp.eq.s32.totalorder %v332, %v520
        %vm565 = vcmp.eq.s32.totalorder %v332, %v524
        %vm566 = vcmp.eq.s32.totalorder %v332, %v528
        %vm567 = vcmp.eq.s32.totalorder %v332, %v532
        %vm568 = vcmp.eq.s32.totalorder %v332, %v536
        %vm569 = vcmp.eq.s32.totalorder %v333, %v508
        %vm570 = vcmp.eq.s32.totalorder %v333, %v512
        %vm571 = vcmp.eq.s32.totalorder %v333, %v516
        %vm572 = vcmp.eq.s32.totalorder %v333, %v520
        %vm573 = vcmp.eq.s32.totalorder %v333, %v524
        %vm574 = vcmp.eq.s32.totalorder %v333, %v528
        %vm575 = vcmp.eq.s32.totalorder %v333, %v532
        %vm576 = vcmp.eq.s32.totalorder %v333, %v536
        %vm577 = vcmp.eq.s32.totalorder %v334, %v508
        %vm578 = vcmp.eq.s32.totalorder %v334, %v512
        %vm579 = vcmp.eq.s32.totalorder %v334, %v516
        %vm580 = vcmp.eq.s32.totalorder %v334, %v520
        %vm581 = vcmp.eq.s32.totalorder %v334, %v524
        %vm582 = vcmp.eq.s32.totalorder %v334, %v528
        %vm583 = vcmp.eq.s32.totalorder %v334, %v532
        %vm584 = vcmp.eq.s32.totalorder %v334, %v536
        %vm585 = vcmp.eq.s32.totalorder %v335, %v508
        %vm586 = vcmp.eq.s32.totalorder %v335, %v512
        %vm587 = vcmp.eq.s32.totalorder %v335, %v516
        %vm588 = vcmp.eq.s32.totalorder %v335, %v520
        %vm589 = vcmp.eq.s32.totalorder %v335, %v524
        %vm590 = vcmp.eq.s32.totalorder %v335, %v528
        %vm591 = vcmp.eq.s32.totalorder %v335, %v532
        %vm592 = vcmp.eq.s32.totalorder %v335, %v536
        %vm593 = vcmp.eq.s32.totalorder %v336, %v508
        %vm594 = vcmp.eq.s32.totalorder %v336, %v512
        %vm595 = vcmp.eq.s32.totalorder %v336, %v516
        %vm596 = vcmp.eq.s32.totalorder %v336, %v520
        %vm597 = vcmp.eq.s32.totalorder %v336, %v524
        %vm598 = vcmp.eq.s32.totalorder %v336, %v528
        %vm599 = vcmp.eq.s32.totalorder %v336, %v532
        %vm600 = vcmp.eq.s32.totalorder %v336, %v536
        %vm601 = vcmp.eq.s32.totalorder %v337, %v508
        %vm602 = vcmp.eq.s32.totalorder %v337, %v512
        %vm603 = vcmp.eq.s32.totalorder %v337, %v516
        %vm604 = vcmp.eq.s32.totalorder %v337, %v520
        %vm605 = vcmp.eq.s32.totalorder %v337, %v524
        %vm606 = vcmp.eq.s32.totalorder %v337, %v528
        %vm607 = vcmp.eq.s32.totalorder %v337, %v532
        %vm608 = vcmp.eq.s32.totalorder %v337, %v536
        %vm609 = vcmp.eq.s32.totalorder %v338, %v508
        %vm610 = vcmp.eq.s32.totalorder %v338, %v512
        %vm611 = vcmp.eq.s32.totalorder %v338, %v516
        %vm612 = vcmp.eq.s32.totalorder %v338, %v520
        %vm613 = vcmp.eq.s32.totalorder %v338, %v524
        %vm614 = vcmp.eq.s32.totalorder %v338, %v528
        %vm615 = vcmp.eq.s32.totalorder %v338, %v532
        %vm616 = vcmp.eq.s32.totalorder %v338, %v536
        %vm617 = vcmp.eq.s32.totalorder %v339, %v508
        %vm618 = vcmp.eq.s32.totalorder %v339, %v512
        %vm619 = vcmp.eq.s32.totalorder %v339, %v516
        %vm620 = vcmp.eq.s32.totalorder %v339, %v520
        %vm621 = vcmp.eq.s32.totalorder %v339, %v524
        %vm622 = vcmp.eq.s32.totalorder %v339, %v528
        %vm623 = vcmp.eq.s32.totalorder %v339, %v532
        %vm624 = vcmp.eq.s32.totalorder %v339, %v536
        %vm625 = vcmp.eq.s32.totalorder %v340, %v508
        %vm626 = vcmp.eq.s32.totalorder %v340, %v512
        %vm627 = vcmp.eq.s32.totalorder %v340, %v516
        %vm628 = vcmp.eq.s32.totalorder %v340, %v520
        %vm629 = vcmp.eq.s32.totalorder %v340, %v524
        %vm630 = vcmp.eq.s32.totalorder %v340, %v528
        %vm631 = vcmp.eq.s32.totalorder %v340, %v532
        %vm632 = vcmp.eq.s32.totalorder %v340, %v536
        %vm633 = vcmp.eq.s32.totalorder %v341, %v508
        %vm634 = vcmp.eq.s32.totalorder %v341, %v512
        %vm635 = vcmp.eq.s32.totalorder %v341, %v516
        %vm636 = vcmp.eq.s32.totalorder %v341, %v520
        %vm637 = vcmp.eq.s32.totalorder %v341, %v524
        %vm638 = vcmp.eq.s32.totalorder %v341, %v528
        %vm639 = vcmp.eq.s32.totalorder %v341, %v532
        %vm640 = vcmp.eq.s32.totalorder %v341, %v536
        %vm641 = vcmp.eq.s32.totalorder %v342, %v508
        %vm642 = vcmp.eq.s32.totalorder %v342, %v512
        %vm643 = vcmp.eq.s32.totalorder %v342, %v516
        %vm644 = vcmp.eq.s32.totalorder %v342, %v520
        %vm645 = vcmp.eq.s32.totalorder %v342, %v524
        %vm646 = vcmp.eq.s32.totalorder %v342, %v528
        %vm647 = vcmp.eq.s32.totalorder %v342, %v532
        %vm648 = vcmp.eq.s32.totalorder %v342, %v536
        %vm649 = vcmp.eq.s32.totalorder %v343, %v508
        %vm650 = vcmp.eq.s32.totalorder %v343, %v512
        %vm651 = vcmp.eq.s32.totalorder %v343, %v516
        %vm652 = vcmp.eq.s32.totalorder %v343, %v520
        %vm653 = vcmp.eq.s32.totalorder %v343, %v524
        %vm654 = vcmp.eq.s32.totalorder %v343, %v528
        %vm655 = vcmp.eq.s32.totalorder %v343, %v532
        %vm656 = vcmp.eq.s32.totalorder %v343, %v536
        %vm657 = vcmp.eq.s32.totalorder %v344, %v508
        %vm658 = vcmp.eq.s32.totalorder %v344, %v512
        %vm659 = vcmp.eq.s32.totalorder %v344, %v516
        %vm660 = vcmp.eq.s32.totalorder %v344, %v520
        %vm661 = vcmp.eq.s32.totalorder %v344, %v524
        %vm662 = vcmp.eq.s32.totalorder %v344, %v528
        %vm663 = vcmp.eq.s32.totalorder %v344, %v532
        %vm664 = vcmp.eq.s32.totalorder %v344, %v536
        %vm665 = vmor %vm377, %vm537
        %vm666 = vmor %vm378, %vm538
        %vm667 = vmor %vm379, %vm539
        %vm668 = vmor %vm380, %vm540
        %vm669 = vmor %vm381, %vm541
        %vm670 = vmor %vm382, %vm542
        %vm671 = vmor %vm383, %vm543
        %vm672 = vmor %vm384, %vm544
        %vm673 = vmor %vm385, %vm545
        %vm674 = vmor %vm386, %vm546
        %vm675 = vmor %vm387, %vm547
        %vm676 = vmor %vm388, %vm548
        %vm677 = vmor %vm389, %vm549
        %vm678 = vmor %vm390, %vm550
        %vm679 = vmor %vm391, %vm551
        %vm680 = vmor %vm392, %vm552
        %vm681 = vmor %vm393, %vm553
        %vm682 = vmor %vm394, %vm554
        %vm683 = vmor %vm395, %vm555
        %vm684 = vmor %vm396, %vm556
        %vm685 = vmor %vm397, %vm557
        %vm686 = vmor %vm398, %vm558
        %vm687 = vmor %vm399, %vm559
        %vm688 = vmor %vm400, %vm560
        %vm689 = vmor %vm401, %vm561
        %vm690 = vmor %vm402, %vm562
        %vm691 = vmor %vm403, %vm563
        %vm692 = vmor %vm404, %vm564
        %vm693 = vmor %vm405, %vm565
        %vm694 = vmor %vm406, %vm566
        %vm695 = vmor %vm407, %vm567
        %vm696 = vmor %vm408, %vm568
        %vm697 = vmor %vm409, %vm569
        %vm698 = vmor %vm410, %vm570
        %vm699 = vmor %vm411, %vm571
        %vm700 = vmor %vm412, %vm572
        %vm701 = vmor %vm413, %vm573
        %vm702 = vmor %vm414, %vm574
        %vm703 = vmor %vm415, %vm575
        %vm704 = vmor %vm416, %vm576
        %vm705 = vmor %vm417, %vm577
        %vm706 = vmor %vm418, %vm578
        %vm707 = vmor %vm419, %vm579
        %vm708 = vmor %vm420, %vm580
        %vm709 = vmor %vm421, %vm581
        %vm710 = vmor %vm422, %vm582
        %vm711 = vmor %vm423, %vm583
        %vm712 = vmor %vm424, %vm584
        %vm713 = vmor %vm425, %vm585
        %vm714 = vmor %vm426, %vm586
        %vm715 = vmor %vm427, %vm587
        %vm716 = vmor %vm428, %vm588
        %vm717 = vmor %vm429, %vm589
        %vm718 = vmor %vm430, %vm590
        %vm719 = vmor %vm431, %vm591
        %vm720 = vmor %vm432, %vm592
        %vm721 = vmor %vm433, %vm593
        %vm722 = vmor %vm434, %vm594
        %vm723 = vmor %vm435, %vm595
        %vm724 = vmor %vm436, %vm596
        %vm725 = vmor %vm437, %vm597
        %vm726 = vmor %vm438, %vm598
        %vm727 = vmor %vm439, %vm599
        %vm728 = vmor %vm440, %vm600
        %vm729 = vmor %vm441, %vm601
        %vm730 = vmor %vm442, %vm602
        %vm731 = vmor %vm443, %vm603
        %vm732 = vmor %vm444, %vm604
        %vm733 = vmor %vm445, %vm605
        %vm734 = vmor %vm446, %vm606
        %vm735 = vmor %vm447, %vm607
        %vm736 = vmor %vm448, %vm608
        %vm737 = vmor %vm449, %vm609
        %vm738 = vmor %vm450, %vm610
        %vm739 = vmor %vm451, %vm611
        %vm740 = vmor %vm452, %vm612
        %vm741 = vmor %vm453, %vm613
        %vm742 = vmor %vm454, %vm614
        %vm743 = vmor %vm455, %vm615
        %vm744 = vmor %vm456, %vm616
        %vm745 = vmor %vm457, %vm617
        %vm746 = vmor %vm458, %vm618
        %vm747 = vmor %vm459, %vm619
        %vm748 = vmor %vm460, %vm620
        %vm749 = vmor %vm461, %vm621
        %vm750 = vmor %vm462, %vm622
        %vm751 = vmor %vm463, %vm623
        %vm752 = vmor %vm464, %vm624
        %vm753 = vmor %vm465, %vm625
        %vm754 = vmor %vm466, %vm626
        %vm755 = vmor %vm467, %vm627
        %vm756 = vmor %vm468, %vm628
        %vm757 = vmor %vm469, %vm629
        %vm758 = vmor %vm470, %vm630
        %vm759 = vmor %vm471, %vm631
        %vm760 = vmor %vm472, %vm632
        %vm761 = vmor %vm473, %vm633
        %vm762 = vmor %vm474, %vm634
        %vm763 = vmor %vm475, %vm635
        %vm764 = vmor %vm476, %vm636
        %vm765 = vmor %vm477, %vm637
        %vm766 = vmor %vm478, %vm638
        %vm767 = vmor %vm479, %vm639
        %vm768 = vmor %vm480, %vm640
        %vm769 = vmor %vm481, %vm641
        %vm770 = vmor %vm482, %vm642
        %vm771 = vmor %vm483, %vm643
        %vm772 = vmor %vm484, %vm644
        %vm773 = vmor %vm485, %vm645
        %vm774 = vmor %vm486, %vm646
        %vm775 = vmor %vm487, %vm647
        %vm776 = vmor %vm488, %vm648
        %vm777 = vmor %vm489, %vm649
        %vm778 = vmor %vm490, %vm650
        %vm779 = vmor %vm491, %vm651
        %vm780 = vmor %vm492, %vm652
        %vm781 = vmor %vm493, %vm653
        %vm782 = vmor %vm494, %vm654
        %vm783 = vmor %vm495, %vm655
        %vm784 = vmor %vm496, %vm656
        %vm785 = vmor %vm497, %vm657
        %vm786 = vmor %vm498, %vm658
        %vm787 = vmor %vm499, %vm659
        %vm788 = vmor %vm500, %vm660
        %vm789 = vmor %vm501, %vm661
        %vm790 = vmor %vm502, %vm662
        %vm791 = vmor %vm503, %vm663
        %vm792 = vmor %vm504, %vm664
        %v793 = vsel %vm665, 1, 0
        %v794 = vsel %vm666, 1, 0
        %v795 = vsel %vm667, 1, 0
        %v796 = vsel %vm668, 1, 0
        %v797 = vsel %vm669, 1, 0
        %v798 = vsel %vm670, 1, 0
        %v799 = vsel %vm671, 1, 0
        %v800 = vsel %vm672, 1, 0
        %v801 = vsel %vm673, 1, 0
        %v802 = vsel %vm674, 1, 0
        %v803 = vsel %vm675, 1, 0
        %v804 = vsel %vm676, 1, 0
        %v805 = vsel %vm677, 1, 0
        %v806 = vsel %vm678, 1, 0
        %v807 = vsel %vm679, 1, 0
        %v808 = vsel %vm680, 1, 0
        %v809 = vsel %vm681, 1, 0
        %v810 = vsel %vm682, 1, 0
        %v811 = vsel %vm683, 1, 0
        %v812 = vsel %vm684, 1, 0
        %v813 = vsel %vm685, 1, 0
        %v814 = vsel %vm686, 1, 0
        %v815 = vsel %vm687, 1, 0
        %v816 = vsel %vm688, 1, 0
        %v817 = vsel %vm689, 1, 0
        %v818 = vsel %vm690, 1, 0
        %v819 = vsel %vm691, 1, 0
        %v820 = vsel %vm692, 1, 0
        %v821 = vsel %vm693, 1, 0
        %v822 = vsel %vm694, 1, 0
        %v823 = vsel %vm695, 1, 0
        %v824 = vsel %vm696, 1, 0
        %v825 = vsel %vm697, 1, 0
        %v826 = vsel %vm698, 1, 0
        %v827 = vsel %vm699, 1, 0
        %v828 = vsel %vm700, 1, 0
        %v829 = vsel %vm701, 1, 0
        %v830 = vsel %vm702, 1, 0
        %v831 = vsel %vm703, 1, 0
        %v832 = vsel %vm704, 1, 0
        %v833 = vsel %vm705, 1, 0
        %v834 = vsel %vm706, 1, 0
        %v835 = vsel %vm707, 1, 0
        %v836 = vsel %vm708, 1, 0
        %v837 = vsel %vm709, 1, 0
        %v838 = vsel %vm710, 1, 0
        %v839 = vsel %vm711, 1, 0
        %v840 = vsel %vm712, 1, 0
        %v841 = vsel %vm713, 1, 0
        %v842 = vsel %vm714, 1, 0
        %v843 = vsel %vm715, 1, 0
        %v844 = vsel %vm716, 1, 0
        %v845 = vsel %vm717, 1, 0
        %v846 = vsel %vm718, 1, 0
        %v847 = vsel %vm719, 1, 0
        %v848 = vsel %vm720, 1, 0
        %v849 = vsel %vm721, 1, 0
        %v850 = vsel %vm722, 1, 0
        %v851 = vsel %vm723, 1, 0
        %v852 = vsel %vm724, 1, 0
        %v853 = vsel %vm725, 1, 0
        %v854 = vsel %vm726, 1, 0
        %v855 = vsel %vm727, 1, 0
        %v856 = vsel %vm728, 1, 0
        %v857 = vsel %vm729, 1, 0
        %v858 = vsel %vm730, 1, 0
        %v859 = vsel %vm731, 1, 0
        %v860 = vsel %vm732, 1, 0
        %v861 = vsel %vm733, 1, 0
        %v862 = vsel %vm734, 1, 0
        %v863 = vsel %vm735, 1, 0
        %v864 = vsel %vm736, 1, 0
        %v865 = vsel %vm737, 1, 0
        %v866 = vsel %vm738, 1, 0
        %v867 = vsel %vm739, 1, 0
        %v868 = vsel %vm740, 1, 0
        %v869 = vsel %vm741, 1, 0
        %v870 = vsel %vm742, 1, 0
        %v871 = vsel %vm743, 1, 0
        %v872 = vsel %vm744, 1, 0
        %v873 = vsel %vm745, 1, 0
        %v874 = vsel %vm746, 1, 0
        %v875 = vsel %vm747, 1, 0
        %v876 = vsel %vm748, 1, 0
        %v877 = vsel %vm749, 1, 0
        %v878 = vsel %vm750, 1, 0
        %v879 = vsel %vm751, 1, 0
        %v880 = vsel %vm752, 1, 0
        %v881 = vsel %vm753, 1, 0
        %v882 = vsel %vm754, 1, 0
        %v883 = vsel %vm755, 1, 0
        %v884 = vsel %vm756, 1, 0
        %v885 = vsel %vm757, 1, 0
        %v886 = vsel %vm758, 1, 0
        %v887 = vsel %vm759, 1, 0
        %v888 = vsel %vm760, 1, 0
        %v889 = vsel %vm761, 1, 0
        %v890 = vsel %vm762, 1, 0
        %v891 = vsel %vm763, 1, 0
        %v892 = vsel %vm764, 1, 0
        %v893 = vsel %vm765, 1, 0
        %v894 = vsel %vm766, 1, 0
        %v895 = vsel %vm767, 1, 0
        %v896 = vsel %vm768, 1, 0
        %v897 = vsel %vm769, 1, 0
        %v898 = vsel %vm770, 1, 0
        %v899 = vsel %vm771, 1, 0
        %v900 = vsel %vm772, 1, 0
        %v901 = vsel %vm773, 1, 0
        %v902 = vsel %vm774, 1, 0
        %v903 = vsel %vm775, 1, 0
        %v904 = vsel %vm776, 1, 0
        %v905 = vsel %vm777, 1, 0
        %v906 = vsel %vm778, 1, 0
        %v907 = vsel %vm779, 1, 0
        %v908 = vsel %vm780, 1, 0
        %v909 = vsel %vm781, 1, 0
        %v910 = vsel %vm782, 1, 0
        %v911 = vsel %vm783, 1, 0
        %v912 = vsel %vm784, 1, 0
        %v913 = vsel %vm785, 1, 0
        %v914 = vsel %vm786, 1, 0
        %v915 = vsel %vm787, 1, 0
        %v916 = vsel %vm788, 1, 0
        %v917 = vsel %vm789, 1, 0
        %v918 = vsel %vm790, 1, 0
        %v919 = vsel %vm791, 1, 0
        %v920 = vsel %vm792, 1, 0
        %v921 = vcvt.s32.f32 %v793
        %v922 = vcvt.s32.f32 %v794
        %v923 = vcvt.s32.f32 %v795
        %v924 = vcvt.s32.f32 %v796
        %v925 = vcvt.s32.f32 %v797
        %v926 = vcvt.s32.f32 %v798
        %v927 = vcvt.s32.f32 %v799
        %v928 = vcvt.s32.f32 %v800
        %v929 = vcvt.s32.f32 %v801
        %v930 = vcvt.s32.f32 %v802
        %v931 = vcvt.s32.f32 %v803
        %v932 = vcvt.s32.f32 %v804
        %v933 = vcvt.s32.f32 %v805
        %v934 = vcvt.s32.f32 %v806
        %v935 = vcvt.s32.f32 %v807
        %v936 = vcvt.s32.f32 %v808
        %v937 = vcvt.s32.f32 %v809
        %v938 = vcvt.s32.f32 %v810
        %v939 = vcvt.s32.f32 %v811
        %v940 = vcvt.s32.f32 %v812
        %v941 = vcvt.s32.f32 %v813
        %v942 = vcvt.s32.f32 %v814
        %v943 = vcvt.s32.f32 %v815
        %v944 = vcvt.s32.f32 %v816
        %v945 = vcvt.s32.f32 %v817
        %v946 = vcvt.s32.f32 %v818
        %v947 = vcvt.s32.f32 %v819
        %v948 = vcvt.s32.f32 %v820
        %v949 = vcvt.s32.f32 %v821
        %v950 = vcvt.s32.f32 %v822
        %v951 = vcvt.s32.f32 %v823
        %v952 = vcvt.s32.f32 %v824
        %v953 = vcvt.s32.f32 %v825
        %v954 = vcvt.s32.f32 %v826
        %v955 = vcvt.s32.f32 %v827
        %v956 = vcvt.s32.f32 %v828
        %v957 = vcvt.s32.f32 %v829
        %v958 = vcvt.s32.f32 %v830
        %v959 = vcvt.s32.f32 %v831
        %v960 = vcvt.s32.f32 %v832
        %v961 = vcvt.s32.f32 %v833
        %v962 = vcvt.s32.f32 %v834
        %v963 = vcvt.s32.f32 %v835
        %v964 = vcvt.s32.f32 %v836
        %v965 = vcvt.s32.f32 %v837
        %v966 = vcvt.s32.f32 %v838
        %v967 = vcvt.s32.f32 %v839
        %v968 = vcvt.s32.f32 %v840
        %v969 = vcvt.s32.f32 %v841
        %v970 = vcvt.s32.f32 %v842
        %v971 = vcvt.s32.f32 %v843
        %v972 = vcvt.s32.f32 %v844
        %v973 = vcvt.s32.f32 %v845
        %v974 = vcvt.s32.f32 %v846
        %v975 = vcvt.s32.f32 %v847
        %v976 = vcvt.s32.f32 %v848
        %v977 = vcvt.s32.f32 %v849
        %v978 = vcvt.s32.f32 %v850
        %v979 = vcvt.s32.f32 %v851
        %v980 = vcvt.s32.f32 %v852
        %v981 = vcvt.s32.f32 %v853
        %v982 = vcvt.s32.f32 %v854
        %v983 = vcvt.s32.f32 %v855
        %v984 = vcvt.s32.f32 %v856
        %v985 = vcvt.s32.f32 %v857
        %v986 = vcvt.s32.f32 %v858
        %v987 = vcvt.s32.f32 %v859
        %v988 = vcvt.s32.f32 %v860
        %v989 = vcvt.s32.f32 %v861
        %v990 = vcvt.s32.f32 %v862
        %v991 = vcvt.s32.f32 %v863
        %v992 = vcvt.s32.f32 %v864
        %v993 = vcvt.s32.f32 %v865
        %v994 = vcvt.s32.f32 %v866
        %v995 = vcvt.s32.f32 %v867
        %v996 = vcvt.s32.f32 %v868
        %v997 = vcvt.s32.f32 %v869
        %v998 = vcvt.s32.f32 %v870
        %v999 = vcvt.s32.f32 %v871
        %v1000 = vcvt.s32.f32 %v872
        %v1001 = vcvt.s32.f32 %v873
        %v1002 = vcvt.s32.f32 %v874
        %v1003 = vcvt.s32.f32 %v875
        %v1004 = vcvt.s32.f32 %v876
        %v1005 = vcvt.s32.f32 %v877
        %v1006 = vcvt.s32.f32 %v878
        %v1007 = vcvt.s32.f32 %v879
        %v1008 = vcvt.s32.f32 %v880
        %v1009 = vcvt.s32.f32 %v881
        %v1010 = vcvt.s32.f32 %v882
        %v1011 = vcvt.s32.f32 %v883
        %v1012 = vcvt.s32.f32 %v884
        %v1013 = vcvt.s32.f32 %v885
        %v1014 = vcvt.s32.f32 %v886
        %v1015 = vcvt.s32.f32 %v887
        %v1016 = vcvt.s32.f32 %v888
        %v1017 = vcvt.s32.f32 %v889
        %v1018 = vcvt.s32.f32 %v890
        %v1019 = vcvt.s32.f32 %v891
        %v1020 = vcvt.s32.f32 %v892
        %v1021 = vcvt.s32.f32 %v893
        %v1022 = vcvt.s32.f32 %v894
        %v1023 = vcvt.s32.f32 %v895
        %v1024 = vcvt.s32.f32 %v896
        %v1025 = vcvt.s32.f32 %v897
        %v1026 = vcvt.s32.f32 %v898
        %v1027 = vcvt.s32.f32 %v899
        %v1028 = vcvt.s32.f32 %v900
        %v1029 = vcvt.s32.f32 %v901
        %v1030 = vcvt.s32.f32 %v902
        %v1031 = vcvt.s32.f32 %v903
        %v1032 = vcvt.s32.f32 %v904
        %v1033 = vcvt.s32.f32 %v905
        %v1034 = vcvt.s32.f32 %v906
        %v1035 = vcvt.s32.f32 %v907
        %v1036 = vcvt.s32.f32 %v908
        %v1037 = vcvt.s32.f32 %v909
        %v1038 = vcvt.s32.f32 %v910
        %v1039 = vcvt.s32.f32 %v911
        %v1040 = vcvt.s32.f32 %v912
        %v1041 = vcvt.s32.f32 %v913
        %v1042 = vcvt.s32.f32 %v914
        %v1043 = vcvt.s32.f32 %v915
        %v1044 = vcvt.s32.f32 %v916
        %v1045 = vcvt.s32.f32 %v917
        %v1046 = vcvt.s32.f32 %v918
        %v1047 = vcvt.s32.f32 %v919
        %v1048 = vcvt.s32.f32 %v920
        %v1049 = vpack.c.bf16 %v929, %v921
        %v1050 = vpack.c.bf16 %v930, %v922
        %v1051 = vpack.c.bf16 %v931, %v923
        %v1052 = vpack.c.bf16 %v932, %v924
        %v1053 = vpack.c.bf16 %v933, %v925
        %v1054 = vpack.c.bf16 %v934, %v926
        %v1055 = vpack.c.bf16 %v935, %v927
        %v1056 = vpack.c.bf16 %v936, %v928
        %v1057 = vpack.c.bf16 %v945, %v937
        %v1058 = vpack.c.bf16 %v946, %v938
        %v1059 = vpack.c.bf16 %v947, %v939
        %v1060 = vpack.c.bf16 %v948, %v940
        %v1061 = vpack.c.bf16 %v949, %v941
        %v1062 = vpack.c.bf16 %v950, %v942
        %v1063 = vpack.c.bf16 %v951, %v943
        %v1064 = vpack.c.bf16 %v952, %v944
        %v1065 = vpack.c.bf16 %v961, %v953
        %v1066 = vpack.c.bf16 %v962, %v954
        %v1067 = vpack.c.bf16 %v963, %v955
        %v1068 = vpack.c.bf16 %v964, %v956
        %v1069 = vpack.c.bf16 %v965, %v957
        %v1070 = vpack.c.bf16 %v966, %v958
        %v1071 = vpack.c.bf16 %v967, %v959
        %v1072 = vpack.c.bf16 %v968, %v960
        %v1073 = vpack.c.bf16 %v977, %v969
        %v1074 = vpack.c.bf16 %v978, %v970
        %v1075 = vpack.c.bf16 %v979, %v971
        %v1076 = vpack.c.bf16 %v980, %v972
        %v1077 = vpack.c.bf16 %v981, %v973
        %v1078 = vpack.c.bf16 %v982, %v974
        %v1079 = vpack.c.bf16 %v983, %v975
        %v1080 = vpack.c.bf16 %v984, %v976
        %v1081 = vpack.c.bf16 %v993, %v985
        %v1082 = vpack.c.bf16 %v994, %v986
        %v1083 = vpack.c.bf16 %v995, %v987
        %v1084 = vpack.c.bf16 %v996, %v988
        %v1085 = vpack.c.bf16 %v997, %v989
        %v1086 = vpack.c.bf16 %v998, %v990
        %v1087 = vpack.c.bf16 %v999, %v991
        %v1088 = vpack.c.bf16 %v1000, %v992
        %v1089 = vpack.c.bf16 %v1009, %v1001
        %v1090 = vpack.c.bf16 %v1010, %v1002
        %v1091 = vpack.c.bf16 %v1011, %v1003
        %v1092 = vpack.c.bf16 %v1012, %v1004
        %v1093 = vpack.c.bf16 %v1013, %v1005
        %v1094 = vpack.c.bf16 %v1014, %v1006
        %v1095 = vpack.c.bf16 %v1015, %v1007
        %v1096 = vpack.c.bf16 %v1016, %v1008
        %v1097 = vpack.c.bf16 %v1025, %v1017
        %v1098 = vpack.c.bf16 %v1026, %v1018
        %v1099 = vpack.c.bf16 %v1027, %v1019
        %v1100 = vpack.c.bf16 %v1028, %v1020
        %v1101 = vpack.c.bf16 %v1029, %v1021
        %v1102 = vpack.c.bf16 %v1030, %v1022
        %v1103 = vpack.c.bf16 %v1031, %v1023
        %v1104 = vpack.c.bf16 %v1032, %v1024
        %v1105 = vpack.c.bf16 %v1041, %v1033
        %v1106 = vpack.c.bf16 %v1042, %v1034
        %v1107 = vpack.c.bf16 %v1043, %v1035
        %v1108 = vpack.c.bf16 %v1044, %v1036
        %v1109 = vpack.c.bf16 %v1045, %v1037
        %v1110 = vpack.c.bf16 %v1046, %v1038
        %v1111 = vpack.c.bf16 %v1047, %v1039
        %v1112 = vpack.c.bf16 %v1048, %v1040
        %v1113 = vld [vmem:[%s2] sm:$0xf]
        %v1114 = vld [vmem:[%s2 + $0x4] sm:$0xf]
        %v1115 = vld [vmem:[%s2 + $0x8] sm:$0xf]
        %v1116 = vld [vmem:[%s2 + $0xc] sm:$0xf]
        %v1117 = vld [vmem:[%s3] sm:$0xff]
        %v1118 = vld [vmem:[%s3 + $0x8] sm:$0xff]
        %v1119 = vld [vmem:[%s3 + $0x10] sm:$0xff]
        %v1120 = vld [vmem:[%s3 + $0x18] sm:$0xff]
        %1122 = vset.pattern.permute.xlu0 0
        %1123 = vperm.xlu0 %1122, %v1117
        %v1124 = vpop.permute.xlu0 %1123
        %1127 = vset.pattern.permute.xlu0 0
        %1128 = vperm.xlu0 %1127, %v1118
        %v1129 = vpop.permute.xlu0 %1128
        %1132 = vset.pattern.permute.xlu0 0
        %1133 = vperm.xlu0 %1132, %v1119
        %v1134 = vpop.permute.xlu0 %1133
        %1137 = vset.pattern.permute.xlu0 0
        %1138 = vperm.xlu0 %1137, %v1120
        %v1139 = vpop.permute.xlu0 %1138
        %v1145 = vunpack.c.l.b16 %v1113
        %v1146 = vunpack.c.l.b16 %v1114
        %v1147 = vunpack.c.l.b16 %v1115
        %v1148 = vunpack.c.l.b16 %v1116
        %v1149 = vpack.c.b16 %v1146, %v1145
        %v1150 = vpack.c.b16 %v1148, %v1147
        %1153 = vmatprep.subr.bf16.mxu0 %v1050
        %1154 = vmatpush1.bf16.msra.mxu0 %v1049
        %1155 = vmatprep.subr.bf16.mxu0 %v1058
        %1156 = vmatpush1.bf16.msra.mxu0 %v1057
        %1157 = vmatprep.subr.bf16.mxu0 %v1066
        %1158 = vmatpush1.bf16.msra.mxu0 %v1065
        %1159 = vmatprep.subr.bf16.mxu0 %v1074
        %1160 = vmatpush1.bf16.msra.mxu0 %v1073
        %1161 = vmatprep.subr.bf16.mxu0 %v1082
        %1162 = vmatpush1.bf16.msra.mxu0 %v1081
        %1163 = vmatprep.subr.bf16.mxu0 %v1090
        %1164 = vmatpush1.bf16.msra.mxu0 %v1089
        %1165 = vmatprep.subr.bf16.mxu0 %v1098
        %1166 = vmatpush1.bf16.msra.mxu0 %v1097
        %1167 = vmatprep.subr.bf16.mxu0 %v1106
        %1168 = vmatpush1.bf16.msra.mxu0 %v1105
        %1169 = vmatprep.subr.bf16.mxu0 0
        %1170 = vmatpush1.bf16.msra.mxu0 0
        %1171 = vmatprep.subr.bf16.mxu0 0
        %1172 = vmatpush1.bf16.msra.mxu0 0
        %1173 = vmatprep.subr.bf16.mxu0 0
        %1174 = vmatpush1.bf16.msra.mxu0 0
        %1175 = vmatprep.subr.bf16.mxu0 0
        %1176 = vmatpush1.bf16.msra.mxu0 0
        %1177 = vmatprep.subr.bf16.mxu0 0
        %1178 = vmatpush1.bf16.msra.mxu0 0
        %1179 = vmatprep.subr.bf16.mxu0 0
        %1180 = vmatpush1.bf16.msra.mxu0 0
        %1181 = vmatprep.subr.bf16.mxu0 0
        %1182 = vmatpush1.bf16.msra.mxu0 0
        %1183 = vmatprep.subr.bf16.mxu0 0
        %1184 = vmatpush1.bf16.msra.mxu0 0
        %1185 = vmatprep.mubr.bf16.mxu0 0
        %1186 = vmatmul.mubr.bf16.gmra.mrb[0].mxu0 %v1149
        %v1187 = vpop.f32.mrb[0].mxu0
        %v1188 = vadd.f32 %v1124, %v1187
        %v1189 = vpop.f32.mrb[0].mxu0
        %v1190 = vadd.f32 %v1124, %v1189
        %v1191 = vpop.f32.mrb[0].mxu0
        %v1192 = vadd.f32 %v1129, %v1191
        %v1193 = vpop.f32.mrb[0].mxu0
        %v1194 = vadd.f32 %v1129, %v1193
        %1195 = vmatprep.mubr.bf16.mxu0 0
        %1196 = vmatmul.mubr.bf16.gmra.mrb[0].mxu0 %v1150
        %v1197 = vpop.f32.mrb[0].mxu0
        %v1198 = vadd.f32 %v1134, %v1197
        %v1199 = vpop.f32.mrb[0].mxu0
        %v1200 = vadd.f32 %v1134, %v1199
        %v1201 = vpop.f32.mrb[0].mxu0
        %v1202 = vadd.f32 %v1139, %v1201
        %v1203 = vpop.f32.mrb[0].mxu0
        %v1204 = vadd.f32 %v1139, %v1203
        %1205 = vdwg.mxu0
        %1206 = vmatprep.subr.bf16.mxu0 %v1052
        %1207 = vmatpush1.bf16.msra.mxu0 %v1051
        %1208 = vmatprep.subr.bf16.mxu0 %v1060
        %1209 = vmatpush1.bf16.msra.mxu0 %v1059
        %1210 = vmatprep.subr.bf16.mxu0 %v1068
        %1211 = vmatpush1.bf16.msra.mxu0 %v1067
        %1212 = vmatprep.subr.bf16.mxu0 %v1076
        %1213 = vmatpush1.bf16.msra.mxu0 %v1075
        %1214 = vmatprep.subr.bf16.mxu0 %v1084
        %1215 = vmatpush1.bf16.msra.mxu0 %v1083
        %1216 = vmatprep.subr.bf16.mxu0 %v1092
        %1217 = vmatpush1.bf16.msra.mxu0 %v1091
        %1218 = vmatprep.subr.bf16.mxu0 %v1100
        %1219 = vmatpush1.bf16.msra.mxu0 %v1099
        %1220 = vmatprep.subr.bf16.mxu0 %v1108
        %1221 = vmatpush1.bf16.msra.mxu0 %v1107
        %1222 = vmatprep.subr.bf16.mxu0 0
        %1223 = vmatpush1.bf16.msra.mxu0 0
        %1224 = vmatprep.subr.bf16.mxu0 0
        %1225 = vmatpush1.bf16.msra.mxu0 0
        %1226 = vmatprep.subr.bf16.mxu0 0
        %1227 = vmatpush1.bf16.msra.mxu0 0
        %1228 = vmatprep.subr.bf16.mxu0 0
        %1229 = vmatpush1.bf16.msra.mxu0 0
        %1230 = vmatprep.subr.bf16.mxu0 0
        %1231 = vmatpush1.bf16.msra.mxu0 0
        %1232 = vmatprep.subr.bf16.mxu0 0
        %1233 = vmatpush1.bf16.msra.mxu0 0
        %1234 = vmatprep.subr.bf16.mxu0 0
        %1235 = vmatpush1.bf16.msra.mxu0 0
        %1236 = vmatprep.subr.bf16.mxu0 0
        %1237 = vmatpush1.bf16.msra.mxu0 0
        %1238 = vmatprep.mubr.bf16.mxu0 0
        %1239 = vmatmul.mubr.bf16.gmra.mrb[0].mxu0 %v1149
        %v1240 = vpop.f32.mrb[0].mxu0
        %v1241 = vadd.f32 %v1124, %v1240
        %v1242 = vpop.f32.mrb[0].mxu0
        %v1243 = vadd.f32 %v1124, %v1242
        %v1244 = vpop.f32.mrb[0].mxu0
        %v1245 = vadd.f32 %v1129, %v1244
        %v1246 = vpop.f32.mrb[0].mxu0
        %v1247 = vadd.f32 %v1129, %v1246
        %1248 = vmatprep.mubr.bf16.mxu0 0
        %1249 = vmatmul.mubr.bf16.gmra.mrb[0].mxu0 %v1150
        %v1250 = vpop.f32.mrb[0].mxu0
        %v1251 = vadd.f32 %v1134, %v1250
        %v1252 = vpop.f32.mrb[0].mxu0
        %v1253 = vadd.f32 %v1134, %v1252
        %v1254 = vpop.f32.mrb[0].mxu0
        %v1255 = vadd.f32 %v1139, %v1254
        %v1256 = vpop.f32.mrb[0].mxu0
        %v1257 = vadd.f32 %v1139, %v1256
        %1258 = vdwg.mxu0
        %1259 = vmatprep.subr.bf16.mxu0 %v1054
        %1260 = vmatpush1.bf16.msra.mxu0 %v1053
        %1261 = vmatprep.subr.bf16.mxu0 %v1062
        %1262 = vmatpush1.bf16.msra.mxu0 %v1061
        %1263 = vmatprep.subr.bf16.mxu0 %v1070
        %1264 = vmatpush1.bf16.msra.mxu0 %v1069
        %1265 = vmatprep.subr.bf16.mxu0 %v1078
        %1266 = vmatpush1.bf16.msra.mxu0 %v1077
        %1267 = vmatprep.subr.bf16.mxu0 %v1086
        %1268 = vmatpush1.bf16.msra.mxu0 %v1085
        %1269 = vmatprep.subr.bf16.mxu0 %v1094
        %1270 = vmatpush1.bf16.msra.mxu0 %v1093
        %1271 = vmatprep.subr.bf16.mxu0 %v1102
        %1272 = vmatpush1.bf16.msra.mxu0 %v1101
        %1273 = vmatprep.subr.bf16.mxu0 %v1110
        %1274 = vmatpush1.bf16.msra.mxu0 %v1109
        %1275 = vmatprep.subr.bf16.mxu0 0
        %1276 = vmatpush1.bf16.msra.mxu0 0
        %1277 = vmatprep.subr.bf16.mxu0 0
        %1278 = vmatpush1.bf16.msra.mxu0 0
        %1279 = vmatprep.subr.bf16.mxu0 0
        %1280 = vmatpush1.bf16.msra.mxu0 0
        %1281 = vmatprep.subr.bf16.mxu0 0
        %1282 = vmatpush1.bf16.msra.mxu0 0
        %1283 = vmatprep.subr.bf16.mxu0 0
        %1284 = vmatpush1.bf16.msra.mxu0 0
        %1285 = vmatprep.subr.bf16.mxu0 0
        %1286 = vmatpush1.bf16.msra.mxu0 0
        %1287 = vmatprep.subr.bf16.mxu0 0
        %1288 = vmatpush1.bf16.msra.mxu0 0
        %1289 = vmatprep.subr.bf16.mxu0 0
        %1290 = vmatpush1.bf16.msra.mxu0 0
        %1291 = vmatprep.mubr.bf16.mxu0 0
        %1292 = vmatmul.mubr.bf16.gmra.mrb[0].mxu0 %v1149
        %v1293 = vpop.f32.mrb[0].mxu0
        %v1294 = vadd.f32 %v1124, %v1293
        %v1295 = vpop.f32.mrb[0].mxu0
        %v1296 = vadd.f32 %v1124, %v1295
        %v1297 = vpop.f32.mrb[0].mxu0
        %v1298 = vadd.f32 %v1129, %v1297
        %v1299 = vpop.f32.mrb[0].mxu0
        %v1300 = vadd.f32 %v1129, %v1299
        %1301 = vmatprep.mubr.bf16.mxu0 0
        %1302 = vmatmul.mubr.bf16.gmra.mrb[0].mxu0 %v1150
        %v1303 = vpop.f32.mrb[0].mxu0
        %v1304 = vadd.f32 %v1134, %v1303
        %v1305 = vpop.f32.mrb[0].mxu0
        %v1306 = vadd.f32 %v1134, %v1305
        %v1307 = vpop.f32.mrb[0].mxu0
        %v1308 = vadd.f32 %v1139, %v1307
        %v1309 = vpop.f32.mrb[0].mxu0
        %v1310 = vadd.f32 %v1139, %v1309
        %1311 = vdwg.mxu0
        %1312 = vmatprep.subr.bf16.mxu0 %v1056
        %1313 = vmatpush1.bf16.msra.mxu0 %v1055
        %1314 = vmatprep.subr.bf16.mxu0 %v1064
        %1315 = vmatpush1.bf16.msra.mxu0 %v1063
        %1316 = vmatprep.subr.bf16.mxu0 %v1072
        %1317 = vmatpush1.bf16.msra.mxu0 %v1071
        %1318 = vmatprep.subr.bf16.mxu0 %v1080
        %1319 = vmatpush1.bf16.msra.mxu0 %v1079
        %1320 = vmatprep.subr.bf16.mxu0 %v1088
        %1321 = vmatpush1.bf16.msra.mxu0 %v1087
        %1322 = vmatprep.subr.bf16.mxu0 %v1096
        %1323 = vmatpush1.bf16.msra.mxu0 %v1095
        %1324 = vmatprep.subr.bf16.mxu0 %v1104
        %1325 = vmatpush1.bf16.msra.mxu0 %v1103
        %1326 = vmatprep.subr.bf16.mxu0 %v1112
        %1327 = vmatpush1.bf16.msra.mxu0 %v1111
        %1328 = vmatprep.subr.bf16.mxu0 0
        %1329 = vmatpush1.bf16.msra.mxu0 0
        %1330 = vmatprep.subr.bf16.mxu0 0
        %1331 = vmatpush1.bf16.msra.mxu0 0
        %1332 = vmatprep.subr.bf16.mxu0 0
        %1333 = vmatpush1.bf16.msra.mxu0 0
        %1334 = vmatprep.subr.bf16.mxu0 0
        %1335 = vmatpush1.bf16.msra.mxu0 0
        %1336 = vmatprep.subr.bf16.mxu0 0
        %1337 = vmatpush1.bf16.msra.mxu0 0
        %1338 = vmatprep.subr.bf16.mxu0 0
        %1339 = vmatpush1.bf16.msra.mxu0 0
        %1340 = vmatprep.subr.bf16.mxu0 0
        %1341 = vmatpush1.bf16.msra.mxu0 0
        %1342 = vmatprep.subr.bf16.mxu0 0
        %1343 = vmatpush1.bf16.msra.mxu0 0
        %1344 = vmatprep.mubr.bf16.mxu0 0
        %1345 = vmatmul.mubr.bf16.gmra.mrb[0].mxu0 %v1149
        %v1346 = vpop.f32.mrb[0].mxu0
        %v1347 = vadd.f32 %v1124, %v1346
        %v1348 = vpop.f32.mrb[0].mxu0
        %v1349 = vadd.f32 %v1124, %v1348
        %v1350 = vpop.f32.mrb[0].mxu0
        %v1351 = vadd.f32 %v1129, %v1350
        %v1352 = vpop.f32.mrb[0].mxu0
        %v1353 = vadd.f32 %v1129, %v1352
        %1354 = vmatprep.mubr.bf16.mxu0 0
        %1355 = vmatmul.mubr.bf16.gmra.mrb[0].mxu0 %v1150
        %v1356 = vpop.f32.mrb[0].mxu0
        %v1357 = vadd.f32 %v1134, %v1356
        %v1358 = vpop.f32.mrb[0].mxu0
        %v1359 = vadd.f32 %v1134, %v1358
        %v1360 = vpop.f32.mrb[0].mxu0
        %v1361 = vadd.f32 %v1139, %v1360
        %v1362 = vpop.f32.mrb[0].mxu0
        %v1363 = vadd.f32 %v1139, %v1362
        %1364 = vdwg.mxu0
        %v1365 = vmax.f32 %v1188, 0.0
        %v1366 = vmax.f32 %v1190, 0.0
        %v1367 = vmax.f32 %v1241, 0.0
        %v1368 = vmax.f32 %v1243, 0.0
        %v1369 = vmax.f32 %v1294, 0.0
        %v1370 = vmax.f32 %v1296, 0.0
        %v1371 = vmax.f32 %v1347, 0.0
        %v1372 = vmax.f32 %v1349, 0.0
        %v1373 = vmax.f32 %v1192, 0.0
        %v1374 = vmax.f32 %v1194, 0.0
        %v1375 = vmax.f32 %v1245, 0.0
        %v1376 = vmax.f32 %v1247, 0.0
        %v1377 = vmax.f32 %v1298, 0.0
        %v1378 = vmax.f32 %v1300, 0.0
        %v1379 = vmax.f32 %v1351, 0.0
        %v1380 = vmax.f32 %v1353, 0.0
        %v1381 = vmax.f32 %v1198, 0.0
        %v1382 = vmax.f32 %v1200, 0.0
        %v1383 = vmax.f32 %v1251, 0.0
        %v1384 = vmax.f32 %v1253, 0.0
        %v1385 = vmax.f32 %v1304, 0.0
        %v1386 = vmax.f32 %v1306, 0.0
        %v1387 = vmax.f32 %v1357, 0.0
        %v1388 = vmax.f32 %v1359, 0.0
        %v1389 = vmax.f32 %v1202, 0.0
        %v1390 = vmax.f32 %v1204, 0.0
        %v1391 = vmax.f32 %v1255, 0.0
        %v1392 = vmax.f32 %v1257, 0.0
        %v1393 = vmax.f32 %v1308, 0.0
        %v1394 = vmax.f32 %v1310, 0.0
        %v1395 = vmax.f32 %v1361, 0.0
        %v1396 = vmax.f32 %v1363, 0.0
        %v1397 = vpack.c.bf16 %v1373, %v1365
        %v1398 = vpack.c.bf16 %v1374, %v1366
        %v1399 = vpack.c.bf16 %v1375, %v1367
        %v1400 = vpack.c.bf16 %v1376, %v1368
        %v1401 = vpack.c.bf16 %v1377, %v1369
        %v1402 = vpack.c.bf16 %v1378, %v1370
        %v1403 = vpack.c.bf16 %v1379, %v1371
        %v1404 = vpack.c.bf16 %v1380, %v1372
        %v1405 = vpack.c.bf16 %v1389, %v1381
        %v1406 = vpack.c.bf16 %v1390, %v1382
        %v1407 = vpack.c.bf16 %v1391, %v1383
        %v1408 = vpack.c.bf16 %v1392, %v1384
        %v1409 = vpack.c.bf16 %v1393, %v1385
        %v1410 = vpack.c.bf16 %v1394, %v1386
        %v1411 = vpack.c.bf16 %v1395, %v1387
        %v1412 = vpack.c.bf16 %v1396, %v1388
        %v1413 = vld [vmem:[%s4] sm:$0xf]
        %v1414 = vld [vmem:[%s4 + $0x4] sm:$0xf]
        %v1415 = vld [vmem:[%s5] sm:$0xff]
        %v1416 = vld [vmem:[%s5 + $0x8] sm:$0xff]
        %1418 = vset.pattern.permute.xlu0 0
        %1419 = vperm.xlu0 %1418, %v1415
        %v1420 = vpop.permute.xlu0 %1419
        %1423 = vset.pattern.permute.xlu0 0
        %1424 = vperm.xlu0 %1423, %v1416
        %v1425 = vpop.permute.xlu0 %1424
        %v1429 = vunpack.c.l.b16 %v1413
        %v1430 = vunpack.c.l.b16 %v1414
        %v1431 = vpack.c.b16 %v1430, %v1429
        %vm1432 = vcmask 261120
        %v1434 = vsel %vm1432, %v1431, 0
        %1436 = vmatprep.subr.bf16.mxu0 %v1398
        %1437 = vmatpush1.bf16.msra.mxu0 %v1397
        %1438 = vmatprep.subr.bf16.mxu0 %v1406
        %1439 = vmatpush1.bf16.msra.mxu0 %v1405
        %1440 = vmatprep.subr.bf16.mxu0 0
        %1441 = vmatpush1.bf16.msra.mxu0 0
        %1442 = vmatprep.subr.bf16.mxu0 0
        %1443 = vmatpush1.bf16.msra.mxu0 0
        %1444 = vmatprep.subr.bf16.mxu0 0
        %1445 = vmatpush1.bf16.msra.mxu0 0
        %1446 = vmatprep.subr.bf16.mxu0 0
        %1447 = vmatpush1.bf16.msra.mxu0 0
        %1448 = vmatprep.subr.bf16.mxu0 0
        %1449 = vmatpush1.bf16.msra.mxu0 0
        %1450 = vmatprep.subr.bf16.mxu0 0
        %1451 = vmatpush1.bf16.msra.mxu0 0
        %1452 = vmatprep.subr.bf16.mxu0 0
        %1453 = vmatpush1.bf16.msra.mxu0 0
        %1454 = vmatprep.subr.bf16.mxu0 0
        %1455 = vmatpush1.bf16.msra.mxu0 0
        %1456 = vmatprep.subr.bf16.mxu0 0
        %1457 = vmatpush1.bf16.msra.mxu0 0
        %1458 = vmatprep.subr.bf16.mxu0 0
        %1459 = vmatpush1.bf16.msra.mxu0 0
        %1460 = vmatprep.subr.bf16.mxu0 0
        %1461 = vmatpush1.bf16.msra.mxu0 0
        %1462 = vmatprep.subr.bf16.mxu0 0
        %1463 = vmatpush1.bf16.msra.mxu0 0
        %1464 = vmatprep.subr.bf16.mxu0 0
        %1465 = vmatpush1.bf16.msra.mxu0 0
        %1466 = vmatprep.subr.bf16.mxu0 0
        %1467 = vmatpush1.bf16.msra.mxu0 0
        %1468 = vmatprep.mubr.bf16.mxu0 0
        %1469 = vmatmul.mubr.bf16.gmra.mrb[0].mxu0 %v1434
        %v1470 = vpop.f32.mrb[0].mxu0
        %v1471 = vadd.f32 %v1420, %v1470
        %v1472 = vpop.f32.mrb[0].mxu0
        %v1473 = vadd.f32 %v1420, %v1472
        %v1474 = vpop.f32.mrb[0].mxu0
        %v1475 = vadd.f32 %v1425, %v1474
        %v1476 = vpop.f32.mrb[0].mxu0
        %v1477 = vadd.f32 %v1425, %v1476
        %1478 = vdwg.mxu0
        %1479 = vmatprep.subr.bf16.mxu0 %v1400
        %1480 = vmatpush1.bf16.msra.mxu0 %v1399
        %1481 = vmatprep.subr.bf16.mxu0 %v1408
        %1482 = vmatpush1.bf16.msra.mxu0 %v1407
        %1483 = vmatprep.subr.bf16.mxu0 0
        %1484 = vmatpush1.bf16.msra.mxu0 0
        %1485 = vmatprep.subr.bf16.mxu0 0
        %1486 = vmatpush1.bf16.msra.mxu0 0
        %1487 = vmatprep.subr.bf16.mxu0 0
        %1488 = vmatpush1.bf16.msra.mxu0 0
        %1489 = vmatprep.subr.bf16.mxu0 0
        %1490 = vmatpush1.bf16.msra.mxu0 0
        %1491 = vmatprep.subr.bf16.mxu0 0
        %1492 = vmatpush1.bf16.msra.mxu0 0
        %1493 = vmatprep.subr.bf16.mxu0 0
        %1494 = vmatpush1.bf16.msra.mxu0 0
        %1495 = vmatprep.subr.bf16.mxu0 0
        %1496 = vmatpush1.bf16.msra.mxu0 0
        %1497 = vmatprep.subr.bf16.mxu0 0
        %1498 = vmatpush1.bf16.msra.mxu0 0
        %1499 = vmatprep.subr.bf16.mxu0 0
        %1500 = vmatpush1.bf16.msra.mxu0 0
        %1501 = vmatprep.subr.bf16.mxu0 0
        %1502 = vmatpush1.bf16.msra.mxu0 0
        %1503 = vmatprep.subr.bf16.mxu0 0
        %1504 = vmatpush1.bf16.msra.mxu0 0
        %1505 = vmatprep.subr.bf16.mxu0 0
        %1506 = vmatpush1.bf16.msra.mxu0 0
        %1507 = vmatprep.subr.bf16.mxu0 0
        %1508 = vmatpush1.bf16.msra.mxu0 0
        %1509 = vmatprep.subr.bf16.mxu0 0
        %1510 = vmatpush1.bf16.msra.mxu0 0
        %1511 = vmatprep.mubr.bf16.mxu0 0
        %1512 = vmatmul.mubr.bf16.gmra.mrb[0].mxu0 %v1434
        %v1513 = vpop.f32.mrb[0].mxu0
        %v1514 = vadd.f32 %v1420, %v1513
        %v1515 = vpop.f32.mrb[0].mxu0
        %v1516 = vadd.f32 %v1420, %v1515
        %v1517 = vpop.f32.mrb[0].mxu0
        %v1518 = vadd.f32 %v1425, %v1517
        %v1519 = vpop.f32.mrb[0].mxu0
        %v1520 = vadd.f32 %v1425, %v1519
        %1521 = vdwg.mxu0
        %1522 = vmatprep.subr.bf16.mxu0 %v1402
        %1523 = vmatpush1.bf16.msra.mxu0 %v1401
        %1524 = vmatprep.subr.bf16.mxu0 %v1410
        %1525 = vmatpush1.bf16.msra.mxu0 %v1409
        %1526 = vmatprep.subr.bf16.mxu0 0
        %1527 = vmatpush1.bf16.msra.mxu0 0
        %1528 = vmatprep.subr.bf16.mxu0 0
        %1529 = vmatpush1.bf16.msra.mxu0 0
        %1530 = vmatprep.subr.bf16.mxu0 0
        %1531 = vmatpush1.bf16.msra.mxu0 0
        %1532 = vmatprep.subr.bf16.mxu0 0
        %1533 = vmatpush1.bf16.msra.mxu0 0
        %1534 = vmatprep.subr.bf16.mxu0 0
        %1535 = vmatpush1.bf16.msra.mxu0 0
        %1536 = vmatprep.subr.bf16.mxu0 0
        %1537 = vmatpush1.bf16.msra.mxu0 0
        %1538 = vmatprep.subr.bf16.mxu0 0
        %1539 = vmatpush1.bf16.msra.mxu0 0
        %1540 = vmatprep.subr.bf16.mxu0 0
        %1541 = vmatpush1.bf16.msra.mxu0 0
        %1542 = vmatprep.subr.bf16.mxu0 0
        %1543 = vmatpush1.bf16.msra.mxu0 0
        %1544 = vmatprep.subr.bf16.mxu0 0
        %1545 = vmatpush1.bf16.msra.mxu0 0
        %1546 = vmatprep.subr.bf16.mxu0 0
        %1547 = vmatpush1.bf16.msra.mxu0 0
        %1548 = vmatprep.subr.bf16.mxu0 0
        %1549 = vmatpush1.bf16.msra.mxu0 0
        %1550 = vmatprep.subr.bf16.mxu0 0
        %1551 = vmatpush1.bf16.msra.mxu0 0
        %1552 = vmatprep.subr.bf16.mxu0 0
        %1553 = vmatpush1.bf16.msra.mxu0 0
        %1554 = vmatprep.mubr.bf16.mxu0 0
        %1555 = vmatmul.mubr.bf16.gmra.mrb[0].mxu0 %v1434
        %v1556 = vpop.f32.mrb[0].mxu0
        %v1557 = vadd.f32 %v1420, %v1556
        %v1558 = vpop.f32.mrb[0].mxu0
        %v1559 = vadd.f32 %v1420, %v1558
        %v1560 = vpop.f32.mrb[0].mxu0
        %v1561 = vadd.f32 %v1425, %v1560
        %v1562 = vpop.f32.mrb[0].mxu0
        %v1563 = vadd.f32 %v1425, %v1562
        %1564 = vdwg.mxu0
        %1565 = vmatprep.subr.bf16.mxu0 %v1404
        %1566 = vmatpush1.bf16.msra.mxu0 %v1403
        %1567 = vmatprep.subr.bf16.mxu0 %v1412
        %1568 = vmatpush1.bf16.msra.mxu0 %v1411
        %1569 = vmatprep.subr.bf16.mxu0 0
        %1570 = vmatpush1.bf16.msra.mxu0 0
        %1571 = vmatprep.subr.bf16.mxu0 0
        %1572 = vmatpush1.bf16.msra.mxu0 0
        %1573 = vmatprep.subr.bf16.mxu0 0
        %1574 = vmatpush1.bf16.msra.mxu0 0
        %1575 = vmatprep.subr.bf16.mxu0 0
        %1576 = vmatpush1.bf16.msra.mxu0 0
        %1577 = vmatprep.subr.bf16.mxu0 0
        %1578 = vmatpush1.bf16.msra.mxu0 0
        %1579 = vmatprep.subr.bf16.mxu0 0
        %1580 = vmatpush1.bf16.msra.mxu0 0
        %1581 = vmatprep.subr.bf16.mxu0 0
        %1582 = vmatpush1.bf16.msra.mxu0 0
        %1583 = vmatprep.subr.bf16.mxu0 0
        %1584 = vmatpush1.bf16.msra.mxu0 0
        %1585 = vmatprep.subr.bf16.mxu0 0
        %1586 = vmatpush1.bf16.msra.mxu0 0
        %1587 = vmatprep.subr.bf16.mxu0 0
        %1588 = vmatpush1.bf16.msra.mxu0 0
        %1589 = vmatprep.subr.bf16.mxu0 0
        %1590 = vmatpush1.bf16.msra.mxu0 0
        %1591 = vmatprep.subr.bf16.mxu0 0
        %1592 = vmatpush1.bf16.msra.mxu0 0
        %1593 = vmatprep.subr.bf16.mxu0 0
        %1594 = vmatpush1.bf16.msra.mxu0 0
        %1595 = vmatprep.subr.bf16.mxu0 0
        %1596 = vmatpush1.bf16.msra.mxu0 0
        %1597 = vmatprep.mubr.bf16.mxu0 0
        %1598 = vmatmul.mubr.bf16.gmra.mrb[0].mxu0 %v1434
        %v1599 = vpop.f32.mrb[0].mxu0
        %v1600 = vadd.f32 %v1420, %v1599
        %v1601 = vpop.f32.mrb[0].mxu0
        %v1602 = vadd.f32 %v1420, %v1601
        %v1603 = vpop.f32.mrb[0].mxu0
        %v1604 = vadd.f32 %v1425, %v1603
        %v1605 = vpop.f32.mrb[0].mxu0
        %v1606 = vadd.f32 %v1425, %v1605
        %1607 = vdwg.mxu0
        %v1608 = vmax.f32 %v1471, 0.0
        %v1609 = vmax.f32 %v1473, 0.0
        %v1610 = vmax.f32 %v1514, 0.0
        %v1611 = vmax.f32 %v1516, 0.0
        %v1612 = vmax.f32 %v1557, 0.0
        %v1613 = vmax.f32 %v1559, 0.0
        %v1614 = vmax.f32 %v1600, 0.0
        %v1615 = vmax.f32 %v1602, 0.0
        %v1616 = vmax.f32 %v1475, 0.0
        %v1617 = vmax.f32 %v1477, 0.0
        %v1618 = vmax.f32 %v1518, 0.0
        %v1619 = vmax.f32 %v1520, 0.0
        %v1620 = vmax.f32 %v1561, 0.0
        %v1621 = vmax.f32 %v1563, 0.0
        %v1622 = vmax.f32 %v1604, 0.0
        %v1623 = vmax.f32 %v1606, 0.0
        %v1624 = vld [vmem:[%s6] sm:$0xff]
        %v1625 = vld [vmem:[%s6 + $0x8] sm:$0xff]
        %1627 = vset.pattern.permute.xlu0 0
        %1628 = vperm.xlu0 %1627, %v1624
        %v1629 = vpop.permute.xlu0 %1628
        %1632 = vset.pattern.permute.xlu0 0
        %1633 = vperm.xlu0 %1632, %v1625
        %v1634 = vpop.permute.xlu0 %1633
        %v1636 = vmul.f32 %v1608, %v1629
        %v1637 = vmul.f32 %v1609, %v1629
        %v1638 = vmul.f32 %v1610, %v1629
        %v1639 = vmul.f32 %v1611, %v1629
        %v1640 = vmul.f32 %v1612, %v1629
        %v1641 = vmul.f32 %v1613, %v1629
        %v1642 = vmul.f32 %v1614, %v1629
        %v1643 = vmul.f32 %v1615, %v1629
        %v1644 = vmul.f32 %v1616, %v1634
        %v1645 = vmul.f32 %v1617, %v1634
        %v1646 = vmul.f32 %v1618, %v1634
        %v1647 = vmul.f32 %v1619, %v1634
        %v1648 = vmul.f32 %v1620, %v1634
        %v1649 = vmul.f32 %v1621, %v1634
        %v1650 = vmul.f32 %v1622, %v1634
        %v1651 = vmul.f32 %v1623, %v1634
        %v1652 = vadd.f32 %v1636, %v1644
        %v1653 = vrot.slane %v1652, 4
        %v1654 = vadd.f32 %v1652, %v1653
        %v1655 = vrot.slane %v1654, 2
        %v1656 = vadd.f32 %v1654, %v1655
        %v1657 = vrot.slane %v1656, 1
        %v1658 = vadd.f32 %v1656, %v1657
        %v1659 = vadd.f32 %v1637, %v1645
        %v1660 = vrot.slane %v1659, 4
        %v1661 = vadd.f32 %v1659, %v1660
        %v1662 = vrot.slane %v1661, 2
        %v1663 = vadd.f32 %v1661, %v1662
        %v1664 = vrot.slane %v1663, 1
        %v1665 = vadd.f32 %v1663, %v1664
        %v1666 = vadd.f32 %v1638, %v1646
        %v1667 = vrot.slane %v1666, 4
        %v1668 = vadd.f32 %v1666, %v1667
        %v1669 = vrot.slane %v1668, 2
        %v1670 = vadd.f32 %v1668, %v1669
        %v1671 = vrot.slane %v1670, 1
        %v1672 = vadd.f32 %v1670, %v1671
        %v1673 = vadd.f32 %v1639, %v1647
        %v1674 = vrot.slane %v1673, 4
        %v1675 = vadd.f32 %v1673, %v1674
        %v1676 = vrot.slane %v1675, 2
        %v1677 = vadd.f32 %v1675, %v1676
        %v1678 = vrot.slane %v1677, 1
        %v1679 = vadd.f32 %v1677, %v1678
        %v1680 = vadd.f32 %v1640, %v1648
        %v1681 = vrot.slane %v1680, 4
        %v1682 = vadd.f32 %v1680, %v1681
        %v1683 = vrot.slane %v1682, 2
        %v1684 = vadd.f32 %v1682, %v1683
        %v1685 = vrot.slane %v1684, 1
        %v1686 = vadd.f32 %v1684, %v1685
        %v1687 = vadd.f32 %v1641, %v1649
        %v1688 = vrot.slane %v1687, 4
        %v1689 = vadd.f32 %v1687, %v1688
        %v1690 = vrot.slane %v1689, 2
        %v1691 = vadd.f32 %v1689, %v1690
        %v1692 = vrot.slane %v1691, 1
        %v1693 = vadd.f32 %v1691, %v1692
        %v1694 = vadd.f32 %v1642, %v1650
        %v1695 = vrot.slane %v1694, 4
        %v1696 = vadd.f32 %v1694, %v1695
        %v1697 = vrot.slane %v1696, 2
        %v1698 = vadd.f32 %v1696, %v1697
        %v1699 = vrot.slane %v1698, 1
        %v1700 = vadd.f32 %v1698, %v1699
        %v1701 = vadd.f32 %v1643, %v1651
        %v1702 = vrot.slane %v1701, 4
        %v1703 = vadd.f32 %v1701, %v1702
        %v1704 = vrot.slane %v1703, 2
        %v1705 = vadd.f32 %v1703, %v1704
        %v1706 = vrot.slane %v1705, 1
        %v1707 = vadd.f32 %v1705, %v1706
        %v1708 = vld [vmem:[#allocation2] sm:$0x1]
        %1710 = vset.pattern.permute.xlu0 0
        %1711 = vperm.xlu0 %1710, %v1708
        %v1712 = vpop.permute.xlu0 %1711
        %v1714 = vlaneseq
        %v1715 = vshrl.u32 %v1714, 7
        %v1716 = vsub.s32 0, %v1715
        %v1717 = vrot.slane %v1712, %v1716
        %v1718 = vadd.f32 %v1658, %v1717
        %v1719 = vadd.f32 %v1665, %v1717
        %v1720 = vadd.f32 %v1672, %v1717
        %v1721 = vadd.f32 %v1679, %v1717
        %v1722 = vadd.f32 %v1686, %v1717
        %v1723 = vadd.f32 %v1693, %v1717
        %v1724 = vadd.f32 %v1700, %v1717
        %v1725 = vadd.f32 %v1707, %v1717
        %v1726 = vxor.u32 %v1718, 2147483648
        %v1727 = vxor.u32 %v1719, 2147483648
        %v1728 = vxor.u32 %v1720, 2147483648
        %v1729 = vxor.u32 %v1721, 2147483648
        %v1730 = vxor.u32 %v1722, 2147483648
        %v1731 = vxor.u32 %v1723, 2147483648
        %v1732 = vxor.u32 %v1724, 2147483648
        %v1733 = vxor.u32 %v1725, 2147483648
        %v1734 = vmul.f32 %v1726, 1.442695
        %v1735 = vpow.pop %v1734
        %v1736 = vmul.f32 %v1727, 1.442695
        %v1737 = vpow.pop %v1736
        %v1738 = vmul.f32 %v1728, 1.442695
        %v1739 = vpow.pop %v1738
        %v1740 = vmul.f32 %v1729, 1.442695
        %v1741 = vpow.pop %v1740
        %v1742 = vmul.f32 %v1730, 1.442695
        %v1743 = vpow.pop %v1742
        %v1744 = vmul.f32 %v1731, 1.442695
        %v1745 = vpow.pop %v1744
        %v1746 = vmul.f32 %v1732, 1.442695
        %v1747 = vpow.pop %v1746
        %v1748 = vmul.f32 %v1733, 1.442695
        %v1749 = vpow.pop %v1748
        %v1750 = vadd.f32 %v1735, 1.0
        %v1751 = vadd.f32 %v1737, 1.0
        %v1752 = vadd.f32 %v1739, 1.0
        %v1753 = vadd.f32 %v1741, 1.0
        %v1754 = vadd.f32 %v1743, 1.0
        %v1755 = vadd.f32 %v1745, 1.0
        %v1756 = vadd.f32 %v1747, 1.0
        %v1757 = vadd.f32 %v1749, 1.0
        %v1758 = vrcp.pop %v1750
        %v1759 = vmul.f32 1.0, %v1758
        %v1760 = vrcp.pop %v1751
        %v1761 = vmul.f32 1.0, %v1760
        %v1762 = vrcp.pop %v1752
        %v1763 = vmul.f32 1.0, %v1762
        %v1764 = vrcp.pop %v1753
        %v1765 = vmul.f32 1.0, %v1764
        %v1766 = vrcp.pop %v1754
        %v1767 = vmul.f32 1.0, %v1766
        %v1768 = vrcp.pop %v1755
        %v1769 = vmul.f32 1.0, %v1768
        %v1770 = vrcp.pop %v1756
        %v1771 = vmul.f32 1.0, %v1770
        %v1772 = vrcp.pop %v1757
        %v1773 = vmul.f32 1.0, %v1772
        %v1782 = vcombine.low %v1759, %v1761
        %v1783 = vcombine.low %v1763, %v1765
        %v1784 = vcombine.low %v1767, %v1769
        %v1785 = vcombine.low %v1771, %v1773
        %v1787 = vunpack.c.l.s4 1966171168
        %v1788 = vunpack.c.0.s8 %v1787
        %v1789 = vlaneseq
        %v1790 = vshrl.u32 %v1789, 7
        %v1791 = vsub.s32 %v1788, %v1790
        %v1792 = vrot.slane %v1782, %v1791
        %v1794 = vunpack.c.l.s4 1966171168
        %v1795 = vunpack.c.0.s8 %v1794
        %v1796 = vlaneseq
        %v1797 = vshrl.u32 %v1796, 7
        %v1798 = vsub.s32 %v1795, %v1797
        %v1799 = vrot.slane %v1783, %v1798
        %v1801 = vunpack.c.l.s4 1966171168
        %v1802 = vunpack.c.0.s8 %v1801
        %v1803 = vlaneseq
        %v1804 = vshrl.u32 %v1803, 7
        %v1805 = vsub.s32 %v1802, %v1804
        %v1806 = vrot.slane %v1784, %v1805
        %v1808 = vunpack.c.l.s4 1966171168
        %v1809 = vunpack.c.0.s8 %v1808
        %v1810 = vlaneseq
        %v1811 = vshrl.u32 %v1810, 7
        %v1812 = vsub.s32 %v1809, %v1811
        %v1813 = vrot.slane %v1785, %v1812
        %v1814 = vcombine.low %v1792, %v1799
        %v1815 = vcombine.low %v1806, %v1813
        %v1817 = vunpack.c.l.s4 1966171168
        %v1818 = vunpack.c.0.s8 %v1817
        %v1819 = vlaneseq
        %v1820 = vshrl.u32 %v1819, 7
        %v1821 = vsub.s32 %v1818, %v1820
        %v1822 = vrot.slane %v1814, %v1821
        %v1824 = vunpack.c.l.s4 1966171168
        %v1825 = vunpack.c.0.s8 %v1824
        %v1826 = vlaneseq
        %v1827 = vshrl.u32 %v1826, 7
        %v1828 = vsub.s32 %v1825, %v1827
        %v1829 = vrot.slane %v1815, %v1828
        %v1830 = vcombine.low %v1822, %v1829
        %1832 = vst [vmem:[%s313] sm:$0xff] %v1830
        %s1833 = sand.u32 %s210, 1
        %s1834 = scalar_lea.sflag [#allocation4], %s1833
        %s1835 = sand.u32 %s210, 1
        %s1836 = smul.addr %s1835, 8
        %s1837 = scalar_lea.vmem [#allocation3], %s1836
        // Predicated region
        $region53: #{tpu_custom_call.1} parent=51 // pred_check
          %p1838 = pneg %p220
        $region54: #{tpu_custom_call.1} parent=51 // pred_check_branch
          %1840 = sbr.rel (%p1838) target = $region56
        $region55: #{tpu_custom_call.1} parent=51 // pred_region
          %s1841 = smul.u32 8, %s24
          %s1843 = ssub.s32 128, 128
          %1844 = vsyncadd %s1834, %s1843
          %s1845 = smul.addr %s1841, 16
          %s1846 = scalar_lea.hbm %s8, %s1845
          %s1848 = sshll.u32 %s1837, 4
          %s1849 = int_to_ptr.vmem [resolvable:$true] %s1848
          %1851 = dma.vmem_to_hbm [thread:$0]  %s1849, 128, %s1846, %s1834
        $region56: #{tpu_custom_call.1} parent=51 // pred_fallthru
          _
      $region52: #{tpu_custom_call.1} parent=5 // pred_fallthru
        _
      %p1852 = scmp.le.s32.totalorder 2, %s19
      // Predicated region
      $region57: #{tpu_custom_call.1} parent=5 // pred_check
        %p1853 = pneg %p1852
      $region58: #{tpu_custom_call.1} parent=5 // pred_check_branch
        %1855 = sbr.rel (%p1853) target = $region60
      $region59: #{tpu_custom_call.1} parent=5 // pred_region
        %s1856 = ssub.s32 %s19, 2
        // Predicated region
        $region61: #{tpu_custom_call.1} parent=59 // pred_check
          %p1857 = pneg %p226
        $region62: #{tpu_custom_call.1} parent=59 // pred_check_branch
          %1859 = sbr.rel (%p1857) target = $region64
        $region63: #{tpu_custom_call.1} parent=59 // pred_region
          %s1860 = sand.u32 %s211, 1
          %s1861 = scalar_lea.sflag [#allocation4], %s1860
          %s1862 = sand.u32 %s211, 1
          %s1863 = smul.addr %s1862, 8
          %s1864 = scalar_lea.vmem [#allocation3], %s1863
          %1865 = dma.done %s1861, 128
        $region64: #{tpu_custom_call.1} parent=59 // pred_fallthru
          _
      $region60: #{tpu_custom_call.1} parent=5 // pred_fallthru
        _
    $region6: #{tpu_custom_call.1} parent=1 // loop_footer
      %s23 = sadd.s32 1, %s19
    $region7: #{tpu_custom_call.1} parent=1 // loop_footer_branch
      %18 = sbr.rel target = $region3
    $region8: #{tpu_custom_call.1} parent=1 // loop_exit
      _
    %1866 = vsyncpa [#allocation4], 1
    %s1867 = scalar_lea.sflag [#allocation4], 1
    %1868 = vsyncpa %s1867, 1

</llo_original>
